<compile_context>
chip_gen: v7x
topology: tpu7x:2x2x1
jax: 0.10.0
libtpu: 0.0.40
codegen_flags: <defaults>
</compile_context>

<pallas_src>
import math
from functools import partial

import jax
import jax.numpy as jnp
from jax import lax
from jax.experimental import pallas as pl
from jax.experimental.pallas import tpu as pltpu


def _mha_kernel(*refs, nb_head, d_k, has_mask):
    if has_mask:
        (q_ref, k_ref, v_ref, mask_ref,
         wq_ref, wk_ref, wv_ref, wo_ref,
         bq_ref, bk_ref, bv_ref, bo_ref, out_ref) = refs
    else:
        (q_ref, k_ref, v_ref,
         wq_ref, wk_ref, wv_ref, wo_ref,
         bq_ref, bk_ref, bv_ref, bo_ref, out_ref) = refs
        mask_ref = None

    scale = 1.0 / math.sqrt(d_k)

    # Projections: bf16 operands on the MXU, f32 accumulation, f32 bias add.
    q = jnp.dot(q_ref[...], wq_ref[...], preferred_element_type=jnp.float32) + bq_ref[...]
    q = q * scale  # fold 1/sqrt(d_k) once into the (tq, D) query slab
    k = jnp.dot(k_ref[...], wk_ref[...], preferred_element_type=jnp.float32) + bk_ref[...]
    v = jnp.dot(v_ref[...], wv_ref[...], preferred_element_type=jnp.float32) + bv_ref[...]

    q_b = q.astype(jnp.bfloat16)   # (tq, D)
    k_b = k.astype(jnp.bfloat16)   # (S,  D)
    v_b = v.astype(jnp.bfloat16)   # (S,  D)

    if has_mask:
        # Hoisted out of the head loop: one compare+select, reused by every head.
        addmask = jnp.where(mask_ref[...].astype(jnp.float32) == 0.0,
                            -1000000000.0, 0.0)            # (tq, S) f32 additive bias

    wo = wo_ref[...]                                        # (D, D) bf16, (in, out)
    acc = jnp.zeros_like(q)                                 # (tq, D) f32 output accumulator

    for h in range(nb_head):  # static unroll over heads
        lo = h * d_k
        qh = q_b[:, lo:lo + d_k]                            # (tq, d_k)
        kh = k_b[:, lo:lo + d_k]                            # (S,  d_k)
        vh = v_b[:, lo:lo + d_k]                            # (S,  d_k)

        # scores = qh @ kh^T   (scale already folded into q)
        scores = lax.dot_general(qh, kh, (((1,), (1,)), ((), ())),
                                 preferred_element_type=jnp.float32)   # (tq, S)
        if has_mask:
            scores = scores + addmask

        # numerically-stable softmax, normalization via EUP reciprocal
        m = jnp.max(scores, axis=-1, keepdims=True)
        p = jnp.exp(scores - m)
        denom = jnp.sum(p, axis=-1, keepdims=True)
        p = p * pl.reciprocal(denom, approx=True)

        head = jnp.dot(p.astype(jnp.bfloat16), vh,
                       preferred_element_type=jnp.float32)             # (tq, d_k)
        # Accumulate straight through the output projection rows for this head
        # (replaces concat of narrow lane slices + one big matmul).
        acc = acc + jnp.dot(head.astype(jnp.bfloat16), wo[lo:lo + d_k, :],
                            preferred_element_type=jnp.float32)

    out_ref[...] = acc + bo_ref[...]
    # TODO(synk): nn.Dropout(p=0.0) is identity and the `self.attn` attribute is
    # a side effect not returned by forward; both intentionally omitted.


def _pick_tq(S):
    for cand in (512, 256, 128):
        if S % cand == 0:
            return cand
    return S  # small S: one tile covering the full sequence


def multi_head_attention(query, key, value, params, mask=None, *, nb_head):
    B, N, T, D = query.shape
    assert D % nb_head == 0
    d_k = D // nb_head
    S = N * T
    tq = _pick_tq(S)
    n_q = S // tq

    # bf16 activations: halves kernel DMA bytes and VMEM; accumulation stays f32.
    q2 = query.reshape(B, S, D).astype(jnp.bfloat16)
    k2 = key.reshape(B, S, D).astype(jnp.bfloat16)
    v2 = value.reshape(B, S, D).astype(jnp.bfloat16)

    # nn.Linear computes x @ W.T + b; pre-transpose to (in, out) and cast to bf16.
    wq = params["wq"].T.astype(jnp.bfloat16)
    wk = params["wk"].T.astype(jnp.bfloat16)
    wv = params["wv"].T.astype(jnp.bfloat16)
    wo = params["wo"].T.astype(jnp.bfloat16)
    bq = params["bq"].reshape(1, D).astype(jnp.float32)
    bk = params["bk"].reshape(1, D).astype(jnp.float32)
    bv = params["bv"].reshape(1, D).astype(jnp.float32)
    bo = params["bo"].reshape(1, D).astype(jnp.float32)

    has_mask = mask is not None

    inputs = [q2, k2, v2]
    in_specs = [
        pl.BlockSpec((None, tq, D), lambda b, qi: (b, qi, 0)),  # q tile
        pl.BlockSpec((None, S, D), lambda b, qi: (b, 0, 0)),    # full K rows
        pl.BlockSpec((None, S, D), lambda b, qi: (b, 0, 0)),    # full V rows
    ]
    if has_mask:
        # PyTorch broadcasts (B,1,T,T) against (B,h,S,S): only valid when S == T.
        assert mask.shape == (B, T, T) and S == T
        mask_i8 = mask.reshape(B, S, S).astype(jnp.int8)        # 4x less HBM traffic than f32
        inputs.append(mask_i8)
        in_specs.append(pl.BlockSpec((None, tq, S), lambda b, qi: (b, qi, 0)))

    w_spec = pl.BlockSpec((D, D), lambda b, qi: (0, 0))
    b_spec = pl.BlockSpec((1, D), lambda b, qi: (0, 0))
    inputs += [wq, wk, wv, wo, bq, bk, bv, bo]
    in_specs += [w_spec, w_spec, w_spec, w_spec, b_spec, b_spec, b_spec, b_spec]

    out = pl.pallas_call(
        partial(_mha_kernel, nb_head=nb_head, d_k=d_k, has_mask=has_mask),
        out_shape=jax.ShapeDtypeStruct((B, S, D), jnp.float32),
        grid_spec=pltpu.PrefetchScalarGridSpec(
            num_scalar_prefetch=0,
            grid=(B, n_q),
            in_specs=in_specs,
            out_specs=pl.BlockSpec((None, tq, D), lambda b, qi: (b, qi, 0)),
        ),
        compiler_params=pltpu.CompilerParams(
            dimension_semantics=("parallel", "parallel"),
            vmem_limit_bytes=64 * 1024 * 1024,
        ),
    )(*inputs)
    return out  # (B, N*T, d_model) — matches PyTorch forward's return shape


def mha_reference(query, key, value, params, mask, nb_head):
    """Pure-JAX f32 reference mirroring the PyTorch forward."""
    B, N, T, D = query.shape
    d_k = D // nb_head
    S = N * T

    def lin(x, w, b):
        return jnp.matmul(x, w.T) + b

    q = lin(query.reshape(B, S, D), params["wq"], params["bq"])
    k = lin(key.reshape(B, S, D), params["wk"], params["bk"])
    v = lin(value.reshape(B, S, D), params["wv"], params["bv"])
    q = q.reshape(B, S, nb_head, d_k).transpose(0, 2, 1, 3)
    k = k.reshape(B, S, nb_head, d_k).transpose(0, 2, 1, 3)
    v = v.reshape(B, S, nb_head, d_k).transpose(0, 2, 1, 3)
    scores = jnp.matmul(q, k.transpose(0, 1, 3, 2)) / math.sqrt(d_k)
    if mask is not None:
        scores = jnp.where(mask[:, None, :, :] == 0, -1000000000.0, scores)
    p = jax.nn.softmax(scores, axis=-1)
    x = jnp.matmul(p, v)
    x = x.transpose(0, 2, 1, 3).reshape(B, S, D)
    return jnp.matmul(x, params["wo"].T) + params["bo"]


if __name__ == "__main__":
    B, N, T = 2, 1, 8          # batch, "N" groups, time
    nb_head, d_model = 4, 32   # d_k = 8

    ks = jax.random.split(jax.random.PRNGKey(0), 12)
    params = {
        "wq": jax.random.normal(ks[0], (d_model, d_model), jnp.float32) * 0.1,
        "bq": jax.random.normal(ks[1], (d_model,), jnp.float32) * 0.01,
        "wk": jax.random.normal(ks[2], (d_model, d_model), jnp.float32) * 0.1,
        "bk": jax.random.normal(ks[3], (d_model,), jnp.float32) * 0.01,
        "wv": jax.random.normal(ks[4], (d_model, d_model), jnp.float32) * 0.1,
        "bv": jax.random.normal(ks[5], (d_model,), jnp.float32) * 0.01,
        "wo": jax.random.normal(ks[6], (d_model, d_model), jnp.float32) * 0.1,
        "bo": jax.random.normal(ks[7], (d_model,), jnp.float32) * 0.01,
    }
    q_in = jax.random.normal(ks[8], (B, N, T, d_model), jnp.float32)
    k_in = jax.random.normal(ks[9], (B, N, T, d_model), jnp.float32)
    v_in = jax.random.normal(ks[10], (B, N, T, d_model), jnp.float32)
    # causal 0/1 mask, shape (batch, T, T) like the PyTorch docstring
    mask = jnp.broadcast_to(jnp.tril(jnp.ones((T, T), jnp.float32)), (B, T, T))

    # masked path
    out = multi_head_attention(q_in, k_in, v_in, params, mask=mask, nb_head=nb_head)
    out = jax.block_until_ready(out)
    ref = mha_reference(q_in, k_in, v_in, params, mask, nb_head)
    assert out.shape == (B, N * T, d_model)
    err = float(jnp.max(jnp.abs(out - ref)))
    assert jnp.allclose(out, ref, atol=2e-2, rtol=2e-2), err  # bf16 matmul tolerance

    # mask=None path (no (B,S,S) ones array, no mask input at all)
    out_nm = multi_head_attention(q_in, k_in, v_in, params, mask=None, nb_head=nb_head)
    out_nm = jax.block_until_ready(out_nm)
    ref_nm = mha_reference(q_in, k_in, v_in, params, None, nb_head)
    err_nm = float(jnp.max(jnp.abs(out_nm - ref_nm)))
    assert jnp.allclose(out_nm, ref_nm, atol=2e-2, rtol=2e-2), err_nm

    print("KERNEL_OK")
</pallas_src>

<mosaic_0001>
module attributes {stable_mosaic.version = 11 : i64} {
  func.func @_mha_kernel(%arg0: i32, %arg1: i32, %arg2: memref<1x8x32xbf16, #tpu.memory_space<vmem>>, %arg3: memref<1x8x32xbf16, #tpu.memory_space<vmem>>, %arg4: memref<1x8x32xbf16, #tpu.memory_space<vmem>>, %arg5: memref<1x8x8xi8, #tpu.memory_space<vmem>>, %arg6: memref<32x32xbf16, #tpu.memory_space<vmem>>, %arg7: memref<32x32xbf16, #tpu.memory_space<vmem>>, %arg8: memref<32x32xbf16, #tpu.memory_space<vmem>>, %arg9: memref<32x32xbf16, #tpu.memory_space<vmem>>, %arg10: memref<1x32xf32, #tpu.memory_space<vmem>>, %arg11: memref<1x32xf32, #tpu.memory_space<vmem>>, %arg12: memref<1x32xf32, #tpu.memory_space<vmem>>, %arg13: memref<1x32xf32, #tpu.memory_space<vmem>>, %arg14: memref<1x8x32xf32, #tpu.memory_space<vmem>>) attributes {dimension_semantics = [#tpu.dimension_semantics<parallel>, #tpu.dimension_semantics<parallel>], iteration_bounds = array<i64: 2, 1>, scalar_prefetch = 0 : i64, scratch_operands = 0 : i64, tpu.core_type = #tpu.core_type<tc>, window_params = [{transform_indices = @transform_0, window_bounds = array<i64: 1, 8, 32>}, {transform_indices = @transform_1, window_bounds = array<i64: 1, 8, 32>}, {transform_indices = @transform_2, window_bounds = array<i64: 1, 8, 32>}, {transform_indices = @transform_3, window_bounds = array<i64: 1, 8, 8>}, {pipeline_mode = #tpu.pipeline_mode<synchronous>, transform_indices = @transform_4, window_bounds = array<i64: 32, 32>}, {pipeline_mode = #tpu.pipeline_mode<synchronous>, transform_indices = @transform_5, window_bounds = array<i64: 32, 32>}, {pipeline_mode = #tpu.pipeline_mode<synchronous>, transform_indices = @transform_6, window_bounds = array<i64: 32, 32>}, {pipeline_mode = #tpu.pipeline_mode<synchronous>, transform_indices = @transform_7, window_bounds = array<i64: 32, 32>}, {pipeline_mode = #tpu.pipeline_mode<synchronous>, transform_indices = @transform_8, window_bounds = array<i64: 1, 32>}, {pipeline_mode = #tpu.pipeline_mode<synchronous>, transform_indices = @transform_9, window_bounds = array<i64: 1, 32>}, {pipeline_mode = #tpu.pipeline_mode<synchronous>, transform_indices = @transform_10, window_bounds = array<i64: 1, 32>}, {pipeline_mode = #tpu.pipeline_mode<synchronous>, transform_indices = @transform_11, window_bounds = array<i64: 1, 32>}, {transform_indices = @transform_12, window_bounds = array<i64: 1, 8, 32>}]} {
    %c0 = arith.constant 0 : index
    %c0_0 = arith.constant 0 : index
    %c0_1 = arith.constant 0 : index
    %0 = vector.load %arg2[%c0, %c0_0, %c0_1] : memref<1x8x32xbf16, #tpu.memory_space<vmem>>, vector<1x8x32xbf16>
    %1 = vector.shape_cast %0 : vector<1x8x32xbf16> to vector<8x32xbf16>
    %c0_2 = arith.constant 0 : index
    %c0_3 = arith.constant 0 : index
    %2 = vector.load %arg6[%c0_2, %c0_3] : memref<32x32xbf16, #tpu.memory_space<vmem>>, vector<32x32xbf16>
    %cst = arith.constant dense<0.000000e+00> : vector<8x32xf32>
    %3 = tpu.matmul %1, %2, %cst {dimension_numbers = #tpu.dot_dimension_numbers<[1], [0], [0], [1], [0, 0, 1, 1], [], []>} : vector<8x32xbf16>, vector<32x32xbf16>, vector<8x32xf32> -> vector<8x32xf32>
    %c0_4 = arith.constant 0 : index
    %c0_5 = arith.constant 0 : index
    %4 = vector.load %arg10[%c0_4, %c0_5] : memref<1x32xf32, #tpu.memory_space<vmem>>, vector<1x32xf32>
    %5 = vector.broadcast %4 : vector<1x32xf32> to vector<8x32xf32>
    %6 = arith.addf %3, %5 : vector<8x32xf32>
    %cst_6 = arith.constant 0.353553385 : f32
    %7 = vector.broadcast %cst_6 : f32 to vector<8x32xf32>
    %8 = arith.mulf %6, %7 : vector<8x32xf32>
    %c0_7 = arith.constant 0 : index
    %c0_8 = arith.constant 0 : index
    %c0_9 = arith.constant 0 : index
    %9 = vector.load %arg3[%c0_7, %c0_8, %c0_9] : memref<1x8x32xbf16, #tpu.memory_space<vmem>>, vector<1x8x32xbf16>
    %10 = vector.shape_cast %9 : vector<1x8x32xbf16> to vector<8x32xbf16>
    %c0_10 = arith.constant 0 : index
    %c0_11 = arith.constant 0 : index
    %11 = vector.load %arg7[%c0_10, %c0_11] : memref<32x32xbf16, #tpu.memory_space<vmem>>, vector<32x32xbf16>
    %cst_12 = arith.constant dense<0.000000e+00> : vector<8x32xf32>
    %12 = tpu.matmul %10, %11, %cst_12 {dimension_numbers = #tpu.dot_dimension_numbers<[1], [0], [0], [1], [0, 0, 1, 1], [], []>} : vector<8x32xbf16>, vector<32x32xbf16>, vector<8x32xf32> -> vector<8x32xf32>
    %c0_13 = arith.constant 0 : index
    %c0_14 = arith.constant 0 : index
    %13 = vector.load %arg11[%c0_13, %c0_14] : memref<1x32xf32, #tpu.memory_space<vmem>>, vector<1x32xf32>
    %14 = vector.broadcast %13 : vector<1x32xf32> to vector<8x32xf32>
    %15 = arith.addf %12, %14 : vector<8x32xf32>
    %c0_15 = arith.constant 0 : index
    %c0_16 = arith.constant 0 : index
    %c0_17 = arith.constant 0 : index
    %16 = vector.load %arg4[%c0_15, %c0_16, %c0_17] : memref<1x8x32xbf16, #tpu.memory_space<vmem>>, vector<1x8x32xbf16>
    %17 = vector.shape_cast %16 : vector<1x8x32xbf16> to vector<8x32xbf16>
    %c0_18 = arith.constant 0 : index
    %c0_19 = arith.constant 0 : index
    %18 = vector.load %arg8[%c0_18, %c0_19] : memref<32x32xbf16, #tpu.memory_space<vmem>>, vector<32x32xbf16>
    %cst_20 = arith.constant dense<0.000000e+00> : vector<8x32xf32>
    %19 = tpu.matmul %17, %18, %cst_20 {dimension_numbers = #tpu.dot_dimension_numbers<[1], [0], [0], [1], [0, 0, 1, 1], [], []>} : vector<8x32xbf16>, vector<32x32xbf16>, vector<8x32xf32> -> vector<8x32xf32>
    %c0_21 = arith.constant 0 : index
    %c0_22 = arith.constant 0 : index
    %20 = vector.load %arg12[%c0_21, %c0_22] : memref<1x32xf32, #tpu.memory_space<vmem>>, vector<1x32xf32>
    %21 = vector.broadcast %20 : vector<1x32xf32> to vector<8x32xf32>
    %22 = arith.addf %19, %21 : vector<8x32xf32>
    %23 = arith.truncf %8 : vector<8x32xf32> to vector<8x32xbf16>
    %24 = arith.truncf %15 : vector<8x32xf32> to vector<8x32xbf16>
    %25 = arith.truncf %22 : vector<8x32xf32> to vector<8x32xbf16>
    %c0_23 = arith.constant 0 : index
    %c0_24 = arith.constant 0 : index
    %c0_25 = arith.constant 0 : index
    %26 = vector.load %arg5[%c0_23, %c0_24, %c0_25] : memref<1x8x8xi8, #tpu.memory_space<vmem>>, vector<1x8x8xi8>
    %27 = vector.shape_cast %26 : vector<1x8x8xi8> to vector<8x8xi8>
    %28 = arith.sitofp %27 : vector<8x8xi8> to vector<8x8xf32>
    %cst_26 = arith.constant 0.000000e+00 : f32
    %29 = vector.broadcast %cst_26 : f32 to vector<8x8xf32>
    %30 = arith.cmpf oeq, %28, %29 : vector<8x8xf32>
    %cst_27 = arith.constant -1.000000e+09 : f32
    %cst_28 = arith.constant 0.000000e+00 : f32
    %31 = vector.broadcast %cst_27 : f32 to vector<8x8xf32>
    %32 = vector.broadcast %cst_28 : f32 to vector<8x8xf32>
    %33 = arith.select %30, %31, %32 : vector<8x8xi1>, vector<8x8xf32>
    %c0_29 = arith.constant 0 : index
    %c0_30 = arith.constant 0 : index
    %34 = vector.load %arg9[%c0_29, %c0_30] : memref<32x32xbf16, #tpu.memory_space<vmem>>, vector<32x32xbf16>
    %cst_31 = arith.constant 0.000000e+00 : f32
    %35 = vector.broadcast %cst_31 : f32 to vector<8x32xf32>
    %36 = vector.extract_strided_slice %23 {offsets = [0, 0], sizes = [8, 8], strides = [1, 1]} : vector<8x32xbf16> to vector<8x8xbf16>
    %37 = vector.extract_strided_slice %24 {offsets = [0, 0], sizes = [8, 8], strides = [1, 1]} : vector<8x32xbf16> to vector<8x8xbf16>
    %38 = vector.extract_strided_slice %25 {offsets = [0, 0], sizes = [8, 8], strides = [1, 1]} : vector<8x32xbf16> to vector<8x8xbf16>
    %cst_32 = arith.constant dense<0.000000e+00> : vector<8x8xf32>
    %39 = tpu.matmul %36, %37, %cst_32 {dimension_numbers = #tpu.dot_dimension_numbers<[1], [1], [0], [0], [0, 0, 1, 0], [], []>} : vector<8x8xbf16>, vector<8x8xbf16>, vector<8x8xf32> -> vector<8x8xf32>
    %40 = arith.addf %39, %33 : vector<8x8xf32>
    %cst_33 = arith.constant dense<0xFF800000> : vector<8xf32>
    %41 = vector.multi_reduction <maximumf>, %40, %cst_33 [1] : vector<8x8xf32> to vector<8xf32>
    %42 = vector.shape_cast %41 : vector<8xf32> to vector<8x1xf32>
    %43 = vector.broadcast %42 : vector<8x1xf32> to vector<8x8xf32>
    %44 = arith.subf %40, %43 : vector<8x8xf32>
    %45 = math.exp %44 : vector<8x8xf32>
    %cst_34 = arith.constant dense<0.000000e+00> : vector<8xf32>
    %46 = vector.multi_reduction <add>, %45, %cst_34 [1] : vector<8x8xf32> to vector<8xf32>
    %47 = vector.shape_cast %46 : vector<8xf32> to vector<8x1xf32>
    %48 = tpu.reciprocal %47 {approx = true} : vector<8x1xf32> -> vector<8x1xf32>
    %49 = vector.broadcast %48 : vector<8x1xf32> to vector<8x8xf32>
    %50 = arith.mulf %45, %49 : vector<8x8xf32>
    %51 = arith.truncf %50 : vector<8x8xf32> to vector<8x8xbf16>
    %cst_35 = arith.constant dense<0.000000e+00> : vector<8x8xf32>
    %52 = tpu.matmul %51, %38, %cst_35 {dimension_numbers = #tpu.dot_dimension_numbers<[1], [0], [0], [1], [0, 0, 1, 1], [], []>} : vector<8x8xbf16>, vector<8x8xbf16>, vector<8x8xf32> -> vector<8x8xf32>
    %53 = arith.truncf %52 : vector<8x8xf32> to vector<8x8xbf16>
    %54 = vector.extract_strided_slice %34 {offsets = [0, 0], sizes = [8, 32], strides = [1, 1]} : vector<32x32xbf16> to vector<8x32xbf16>
    %cst_36 = arith.constant dense<0.000000e+00> : vector<8x32xf32>
    %55 = tpu.matmul %53, %54, %cst_36 {dimension_numbers = #tpu.dot_dimension_numbers<[1], [0], [0], [1], [0, 0, 1, 1], [], []>} : vector<8x8xbf16>, vector<8x32xbf16>, vector<8x32xf32> -> vector<8x32xf32>
    %56 = arith.addf %35, %55 : vector<8x32xf32>
    %57 = vector.extract_strided_slice %23 {offsets = [0, 8], sizes = [8, 8], strides = [1, 1]} : vector<8x32xbf16> to vector<8x8xbf16>
    %58 = vector.extract_strided_slice %24 {offsets = [0, 8], sizes = [8, 8], strides = [1, 1]} : vector<8x32xbf16> to vector<8x8xbf16>
    %59 = vector.extract_strided_slice %25 {offsets = [0, 8], sizes = [8, 8], strides = [1, 1]} : vector<8x32xbf16> to vector<8x8xbf16>
    %cst_37 = arith.constant dense<0.000000e+00> : vector<8x8xf32>
    %60 = tpu.matmul %57, %58, %cst_37 {dimension_numbers = #tpu.dot_dimension_numbers<[1], [1], [0], [0], [0, 0, 1, 0], [], []>} : vector<8x8xbf16>, vector<8x8xbf16>, vector<8x8xf32> -> vector<8x8xf32>
    %61 = arith.addf %60, %33 : vector<8x8xf32>
    %cst_38 = arith.constant dense<0xFF800000> : vector<8xf32>
    %62 = vector.multi_reduction <maximumf>, %61, %cst_38 [1] : vector<8x8xf32> to vector<8xf32>
    %63 = vector.shape_cast %62 : vector<8xf32> to vector<8x1xf32>
    %64 = vector.broadcast %63 : vector<8x1xf32> to vector<8x8xf32>
    %65 = arith.subf %61, %64 : vector<8x8xf32>
    %66 = math.exp %65 : vector<8x8xf32>
    %cst_39 = arith.constant dense<0.000000e+00> : vector<8xf32>
    %67 = vector.multi_reduction <add>, %66, %cst_39 [1] : vector<8x8xf32> to vector<8xf32>
    %68 = vector.shape_cast %67 : vector<8xf32> to vector<8x1xf32>
    %69 = tpu.reciprocal %68 {approx = true} : vector<8x1xf32> -> vector<8x1xf32>
    %70 = vector.broadcast %69 : vector<8x1xf32> to vector<8x8xf32>
    %71 = arith.mulf %66, %70 : vector<8x8xf32>
    %72 = arith.truncf %71 : vector<8x8xf32> to vector<8x8xbf16>
    %cst_40 = arith.constant dense<0.000000e+00> : vector<8x8xf32>
    %73 = tpu.matmul %72, %59, %cst_40 {dimension_numbers = #tpu.dot_dimension_numbers<[1], [0], [0], [1], [0, 0, 1, 1], [], []>} : vector<8x8xbf16>, vector<8x8xbf16>, vector<8x8xf32> -> vector<8x8xf32>
    %74 = arith.truncf %73 : vector<8x8xf32> to vector<8x8xbf16>
    %75 = vector.extract_strided_slice %34 {offsets = [8, 0], sizes = [8, 32], strides = [1, 1]} : vector<32x32xbf16> to vector<8x32xbf16>
    %cst_41 = arith.constant dense<0.000000e+00> : vector<8x32xf32>
    %76 = tpu.matmul %74, %75, %cst_41 {dimension_numbers = #tpu.dot_dimension_numbers<[1], [0], [0], [1], [0, 0, 1, 1], [], []>} : vector<8x8xbf16>, vector<8x32xbf16>, vector<8x32xf32> -> vector<8x32xf32>
    %77 = arith.addf %56, %76 : vector<8x32xf32>
    %78 = vector.extract_strided_slice %23 {offsets = [0, 16], sizes = [8, 8], strides = [1, 1]} : vector<8x32xbf16> to vector<8x8xbf16>
    %79 = vector.extract_strided_slice %24 {offsets = [0, 16], sizes = [8, 8], strides = [1, 1]} : vector<8x32xbf16> to vector<8x8xbf16>
    %80 = vector.extract_strided_slice %25 {offsets = [0, 16], sizes = [8, 8], strides = [1, 1]} : vector<8x32xbf16> to vector<8x8xbf16>
    %cst_42 = arith.constant dense<0.000000e+00> : vector<8x8xf32>
    %81 = tpu.matmul %78, %79, %cst_42 {dimension_numbers = #tpu.dot_dimension_numbers<[1], [1], [0], [0], [0, 0, 1, 0], [], []>} : vector<8x8xbf16>, vector<8x8xbf16>, vector<8x8xf32> -> vector<8x8xf32>
    %82 = arith.addf %81, %33 : vector<8x8xf32>
    %cst_43 = arith.constant dense<0xFF800000> : vector<8xf32>
    %83 = vector.multi_reduction <maximumf>, %82, %cst_43 [1] : vector<8x8xf32> to vector<8xf32>
    %84 = vector.shape_cast %83 : vector<8xf32> to vector<8x1xf32>
    %85 = vector.broadcast %84 : vector<8x1xf32> to vector<8x8xf32>
    %86 = arith.subf %82, %85 : vector<8x8xf32>
    %87 = math.exp %86 : vector<8x8xf32>
    %cst_44 = arith.constant dense<0.000000e+00> : vector<8xf32>
    %88 = vector.multi_reduction <add>, %87, %cst_44 [1] : vector<8x8xf32> to vector<8xf32>
    %89 = vector.shape_cast %88 : vector<8xf32> to vector<8x1xf32>
    %90 = tpu.reciprocal %89 {approx = true} : vector<8x1xf32> -> vector<8x1xf32>
    %91 = vector.broadcast %90 : vector<8x1xf32> to vector<8x8xf32>
    %92 = arith.mulf %87, %91 : vector<8x8xf32>
    %93 = arith.truncf %92 : vector<8x8xf32> to vector<8x8xbf16>
    %cst_45 = arith.constant dense<0.000000e+00> : vector<8x8xf32>
    %94 = tpu.matmul %93, %80, %cst_45 {dimension_numbers = #tpu.dot_dimension_numbers<[1], [0], [0], [1], [0, 0, 1, 1], [], []>} : vector<8x8xbf16>, vector<8x8xbf16>, vector<8x8xf32> -> vector<8x8xf32>
    %95 = arith.truncf %94 : vector<8x8xf32> to vector<8x8xbf16>
    %96 = vector.extract_strided_slice %34 {offsets = [16, 0], sizes = [8, 32], strides = [1, 1]} : vector<32x32xbf16> to vector<8x32xbf16>
    %cst_46 = arith.constant dense<0.000000e+00> : vector<8x32xf32>
    %97 = tpu.matmul %95, %96, %cst_46 {dimension_numbers = #tpu.dot_dimension_numbers<[1], [0], [0], [1], [0, 0, 1, 1], [], []>} : vector<8x8xbf16>, vector<8x32xbf16>, vector<8x32xf32> -> vector<8x32xf32>
    %98 = arith.addf %77, %97 : vector<8x32xf32>
    %99 = vector.extract_strided_slice %23 {offsets = [0, 24], sizes = [8, 8], strides = [1, 1]} : vector<8x32xbf16> to vector<8x8xbf16>
    %100 = vector.extract_strided_slice %24 {offsets = [0, 24], sizes = [8, 8], strides = [1, 1]} : vector<8x32xbf16> to vector<8x8xbf16>
    %101 = vector.extract_strided_slice %25 {offsets = [0, 24], sizes = [8, 8], strides = [1, 1]} : vector<8x32xbf16> to vector<8x8xbf16>
    %cst_47 = arith.constant dense<0.000000e+00> : vector<8x8xf32>
    %102 = tpu.matmul %99, %100, %cst_47 {dimension_numbers = #tpu.dot_dimension_numbers<[1], [1], [0], [0], [0, 0, 1, 0], [], []>} : vector<8x8xbf16>, vector<8x8xbf16>, vector<8x8xf32> -> vector<8x8xf32>
    %103 = arith.addf %102, %33 : vector<8x8xf32>
    %cst_48 = arith.constant dense<0xFF800000> : vector<8xf32>
    %104 = vector.multi_reduction <maximumf>, %103, %cst_48 [1] : vector<8x8xf32> to vector<8xf32>
    %105 = vector.shape_cast %104 : vector<8xf32> to vector<8x1xf32>
    %106 = vector.broadcast %105 : vector<8x1xf32> to vector<8x8xf32>
    %107 = arith.subf %103, %106 : vector<8x8xf32>
    %108 = math.exp %107 : vector<8x8xf32>
    %cst_49 = arith.constant dense<0.000000e+00> : vector<8xf32>
    %109 = vector.multi_reduction <add>, %108, %cst_49 [1] : vector<8x8xf32> to vector<8xf32>
    %110 = vector.shape_cast %109 : vector<8xf32> to vector<8x1xf32>
    %111 = tpu.reciprocal %110 {approx = true} : vector<8x1xf32> -> vector<8x1xf32>
    %112 = vector.broadcast %111 : vector<8x1xf32> to vector<8x8xf32>
    %113 = arith.mulf %108, %112 : vector<8x8xf32>
    %114 = arith.truncf %113 : vector<8x8xf32> to vector<8x8xbf16>
    %cst_50 = arith.constant dense<0.000000e+00> : vector<8x8xf32>
    %115 = tpu.matmul %114, %101, %cst_50 {dimension_numbers = #tpu.dot_dimension_numbers<[1], [0], [0], [1], [0, 0, 1, 1], [], []>} : vector<8x8xbf16>, vector<8x8xbf16>, vector<8x8xf32> -> vector<8x8xf32>
    %116 = arith.truncf %115 : vector<8x8xf32> to vector<8x8xbf16>
    %117 = vector.extract_strided_slice %34 {offsets = [24, 0], sizes = [8, 32], strides = [1, 1]} : vector<32x32xbf16> to vector<8x32xbf16>
    %cst_51 = arith.constant dense<0.000000e+00> : vector<8x32xf32>
    %118 = tpu.matmul %116, %117, %cst_51 {dimension_numbers = #tpu.dot_dimension_numbers<[1], [0], [0], [1], [0, 0, 1, 1], [], []>} : vector<8x8xbf16>, vector<8x32xbf16>, vector<8x32xf32> -> vector<8x32xf32>
    %119 = arith.addf %98, %118 : vector<8x32xf32>
    %c0_52 = arith.constant 0 : index
    %c0_53 = arith.constant 0 : index
    %120 = vector.load %arg13[%c0_52, %c0_53] : memref<1x32xf32, #tpu.memory_space<vmem>>, vector<1x32xf32>
    %121 = vector.broadcast %120 : vector<1x32xf32> to vector<8x32xf32>
    %122 = arith.addf %119, %121 : vector<8x32xf32>
    %c0_54 = arith.constant 0 : index
    %c0_55 = arith.constant 0 : index
    %c0_56 = arith.constant 0 : index
    %123 = vector.load %arg14[%c0_54, %c0_55, %c0_56] : memref<1x8x32xf32, #tpu.memory_space<vmem>>, vector<1x8x32xf32>
    %124 = vector.shape_cast %123 : vector<1x8x32xf32> to vector<8x32xf32>
    %125 = vector.shape_cast %122 : vector<8x32xf32> to vector<1x8x32xf32>
    tpu.vector_store %arg14[%c0_54, %c0_55, %c0_56], %125 {strides = array<i32>} : memref<1x8x32xf32, #tpu.memory_space<vmem>>, vector<1x8x32xf32>,
    return
  }
  func.func @transform_0(%arg0: i32, %arg1: i32) -> (i32, i32, i32) {
    %c0_i32 = arith.constant 0 : i32
    %c0_i32_0 = arith.constant 0 : i32
    return %arg0, %arg1, %c0_i32 : i32, i32, i32
  }
  func.func @transform_1(%arg0: i32, %arg1: i32) -> (i32, i32, i32) {
    %c0_i32 = arith.constant 0 : i32
    %c0_i32_0 = arith.constant 0 : i32
    %c0_i32_1 = arith.constant 0 : i32
    return %arg0, %c0_i32, %c0_i32_0 : i32, i32, i32
  }
  func.func @transform_2(%arg0: i32, %arg1: i32) -> (i32, i32, i32) {
    %c0_i32 = arith.constant 0 : i32
    %c0_i32_0 = arith.constant 0 : i32
    %c0_i32_1 = arith.constant 0 : i32
    return %arg0, %c0_i32, %c0_i32_0 : i32, i32, i32
  }
  func.func @transform_3(%arg0: i32, %arg1: i32) -> (i32, i32, i32) {
    %c0_i32 = arith.constant 0 : i32
    %c0_i32_0 = arith.constant 0 : i32
    return %arg0, %arg1, %c0_i32 : i32, i32, i32
  }
  func.func @transform_4(%arg0: i32, %arg1: i32) -> (i32, i32) {
    %c0_i32 = arith.constant 0 : i32
    %c0_i32_0 = arith.constant 0 : i32
    %c0_i32_1 = arith.constant 0 : i32
    return %c0_i32, %c0_i32_0 : i32, i32
  }
  func.func @transform_5(%arg0: i32, %arg1: i32) -> (i32, i32) {
    %c0_i32 = arith.constant 0 : i32
    %c0_i32_0 = arith.constant 0 : i32
    %c0_i32_1 = arith.constant 0 : i32
    return %c0_i32, %c0_i32_0 : i32, i32
  }
  func.func @transform_6(%arg0: i32, %arg1: i32) -> (i32, i32) {
    %c0_i32 = arith.constant 0 : i32
    %c0_i32_0 = arith.constant 0 : i32
    %c0_i32_1 = arith.constant 0 : i32
    return %c0_i32, %c0_i32_0 : i32, i32
  }
  func.func @transform_7(%arg0: i32, %arg1: i32) -> (i32, i32) {
    %c0_i32 = arith.constant 0 : i32
    %c0_i32_0 = arith.constant 0 : i32
    %c0_i32_1 = arith.constant 0 : i32
    return %c0_i32, %c0_i32_0 : i32, i32
  }
  func.func @transform_8(%arg0: i32, %arg1: i32) -> (i32, i32) {
    %c0_i32 = arith.constant 0 : i32
    %c0_i32_0 = arith.constant 0 : i32
    %c0_i32_1 = arith.constant 0 : i32
    return %c0_i32, %c0_i32_0 : i32, i32
  }
  func.func @transform_9(%arg0: i32, %arg1: i32) -> (i32, i32) {
    %c0_i32 = arith.constant 0 : i32
    %c0_i32_0 = arith.constant 0 : i32
    %c0_i32_1 = arith.constant 0 : i32
    return %c0_i32, %c0_i32_0 : i32, i32
  }
  func.func @transform_10(%arg0: i32, %arg1: i32) -> (i32, i32) {
    %c0_i32 = arith.constant 0 : i32
    %c0_i32_0 = arith.constant 0 : i32
    %c0_i32_1 = arith.constant 0 : i32
    return %c0_i32, %c0_i32_0 : i32, i32
  }
  func.func @transform_11(%arg0: i32, %arg1: i32) -> (i32, i32) {
    %c0_i32 = arith.constant 0 : i32
    %c0_i32_0 = arith.constant 0 : i32
    %c0_i32_1 = arith.constant 0 : i32
    return %c0_i32, %c0_i32_0 : i32, i32
  }
  func.func @transform_12(%arg0: i32, %arg1: i32) -> (i32, i32, i32) {
    %c0_i32 = arith.constant 0 : i32
    %c0_i32_0 = arith.constant 0 : i32
    return %arg0, %arg1, %c0_i32 : i32, i32, i32
  }
}

</mosaic_0001>

<llo_original>
// kernel: tpu_custom_call.1
$region0: #{tpu_custom_call.1}
  #allocation0 [shape = 'u32[]', space=smem, size = 0x4, offset = 0x4, fixed_abs, tag = 'smem constant byte address 0x4 - core index']
  #allocation1 [shape = 'u32[144,128]{1,0:T(1,128)}', space=vmem, size = 0x12000, scoped, tag = 'internal scratch']
  %s0 = inlined_call_operand.hbm [shape: bf16[2,8,32], index: 0, kind: input, shape index: {}]
  %s1 = inlined_call_operand.hbm [shape: bf16[2,8,32], index: 1, kind: input, shape index: {}]
  %s2 = inlined_call_operand.hbm [shape: bf16[2,8,32], index: 2, kind: input, shape index: {}]
  %s3 = inlined_call_operand.hbm [shape: s8[2,8,8], index: 3, kind: input, shape index: {}]
  %s4 = inlined_call_operand.hbm [shape: bf16[32,32], index: 4, kind: input, shape index: {}]
  %s5 = inlined_call_operand.hbm [shape: bf16[32,32], index: 5, kind: input, shape index: {}]
  %s6 = inlined_call_operand.hbm [shape: bf16[32,32], index: 6, kind: input, shape index: {}]
  %s7 = inlined_call_operand.hbm [shape: bf16[32,32], index: 7, kind: input, shape index: {}]
  %s8 = inlined_call_operand.hbm [shape: f32[1,32], index: 8, kind: input, shape index: {}]
  %s9 = inlined_call_operand.hbm [shape: f32[1,32], index: 9, kind: input, shape index: {}]
  %s10 = inlined_call_operand.hbm [shape: f32[1,32], index: 10, kind: input, shape index: {}]
  %s11 = inlined_call_operand.hbm [shape: f32[1,32], index: 11, kind: input, shape index: {}]
  %s12 = inlined_call_operand.hbm [shape: f32[2,8,32], index: 12, kind: output, shape index: {}]
  %s13 = sld [smem:[#allocation0]]
  $region129: #{tpu_custom_call.1} parent=0
    _
  %s15 = ssub.s32 1, %s13
  %s16 = scalar_select 0, %s15, %s13
  $region1: #{tpu_custom_call.1} parent=0
    #allocation2 [shape = 'u8[4096]{0}', space=vmem, size = 0x1000, scoped, tag = 'input window, operand 0']
    #allocation3 [shape = 's32[2]{0}', space=sflag, size = 0x8, scoped, tag = 'scoped memory for tpu_custom_call.1']
    #allocation4 [shape = 's32[2]{0}', space=sflag, size = 0x8, scoped, tag = 'scoped memory for tpu_custom_call.1']
    #allocation5 [shape = 'u8[4096]{0}', space=vmem, size = 0x1000, scoped, tag = 'input window, operand 1']
    #allocation6 [shape = 's32[2]{0}', space=sflag, size = 0x8, scoped, tag = 'scoped memory for tpu_custom_call.1']
    #allocation7 [shape = 'u8[4096]{0}', space=vmem, size = 0x1000, scoped, tag = 'input window, operand 2']
    #allocation8 [shape = 'u8[2048]{0}', space=vmem, size = 0x800, scoped, tag = 'input window, operand 3']
    #allocation9 [shape = 's32[2]{0}', space=sflag, size = 0x8, scoped, tag = 'scoped memory for tpu_custom_call.1']
    #allocation10 [shape = 'u8[8192]{0}', space=vmem, size = 0x2000, scoped, tag = 'input window, operand 4, single buffered']
    #allocation11 [shape = 'u8[8192]{0}', space=vmem, size = 0x2000, scoped, tag = 'input window, operand 5, single buffered']
    #allocation12 [shape = 's32[1]{0}', space=sflag, size = 0x4, scoped, tag = 'scoped memory for tpu_custom_call.1']
    #allocation13 [shape = 'u8[8192]{0}', space=vmem, size = 0x2000, scoped, tag = 'input window, operand 6, single buffered']
    #allocation14 [shape = 'u8[8192]{0}', space=vmem, size = 0x2000, scoped, tag = 'input window, operand 7, single buffered']
    #allocation15 [shape = 's32[1]{0}', space=sflag, size = 0x4, scoped, tag = 'scoped memory for tpu_custom_call.1']
    #allocation16 [shape = 'u8[512]{0}', space=vmem, size = 0x400, scoped, tag = 'input window, operand 8, single buffered']
    #allocation17 [shape = 'u8[512]{0}', space=vmem, size = 0x400, scoped, tag = 'input window, operand 9, single buffered']
    #allocation18 [shape = 's32[1]{0}', space=sflag, size = 0x4, scoped, tag = 'scoped memory for tpu_custom_call.1']
    #allocation19 [shape = 'u8[512]{0}', space=vmem, size = 0x400, scoped, tag = 'input window, operand 10, single buffered']
    #allocation20 [shape = 'u8[512]{0}', space=vmem, size = 0x400, scoped, tag = 'input window, operand 11, single buffered']
    #allocation21 [shape = 's32[1]{0}', space=sflag, size = 0x4, scoped, tag = 'scoped memory for tpu_custom_call.1']
    #allocation22 [shape = 'u8[8192]{0}', space=vmem, size = 0x2000, scoped, tag = 'output window, operand 0']
    %17 = vsyncpa [#allocation3], 0
    %s18 = scalar_lea.sflag [#allocation3], 1
    %19 = vsyncpa %s18, 0
    %20 = vsyncpa [#allocation6], 0
    %s21 = scalar_lea.sflag [#allocation6], 1
    %22 = vsyncpa %s21, 0
    %23 = vsyncpa [#allocation9], 0
    %s24 = scalar_lea.sflag [#allocation9], 1
    %25 = vsyncpa %s24, 0
    %26 = vsyncpa [#allocation12], 0
    %27 = vsyncpa [#allocation15], 0
    %28 = vsyncpa [#allocation18], 0
    %29 = vsyncpa [#allocation21], 0
    %30 = vsyncpa [#allocation4], 0
    %s31 = scalar_lea.sflag [#allocation4], 1
    %32 = vsyncpa %s31, 0
    loop: start=0, step=1, limit=4
    $region2: #{tpu_custom_call.1} parent=1 // loop_pre_header
      _
    $region3: #{tpu_custom_call.1} parent=1 // loop_header
      %s34 = sphi 0, %s38
      %p35 = scmp.ge.s32.totalorder %s34, 4
      %s41 = sphi 0, %s53
      %s42 = sphi 0, %s49
      %s43 = sphi 0, %s41
      %s44 = sphi 0, %s42
      %s45 = sphi 0, %s43
      %s46 = sphi 0, %s44
      %s58 = sphi 0, %s60
      %s61 = sphi 0, %s58
      %s62 = sphi 0, %s61
      %s78 = sphi 0, %s62
      %s84 = sphi 0, %s86
      %s87 = sphi 0, %s84
      %s88 = sphi 0, %s87
      %s104 = sphi 0, %s88
      %s110 = sphi 0, %s112
      %s113 = sphi 0, %s110
      %s114 = sphi 0, %s113
      %s130 = sphi 0, %s114
      %s138 = sphi 0, %s140
      %s141 = sphi 0, %s138
      %s142 = sphi 0, %s141
      %s158 = sphi 0, %s142
      %s162 = sphi 0, %s162
      %s164 = sphi 0, %s162
      %s165 = sphi 0, %s164
      %s179 = sphi 0, %s165
      %s183 = sphi 0, %s183
      %s185 = sphi 0, %s183
      %s186 = sphi 0, %s185
      %s200 = sphi 0, %s186
      %s204 = sphi 0, %s204
      %s206 = sphi 0, %s204
      %s207 = sphi 0, %s206
      %s221 = sphi 0, %s207
      %s225 = sphi 0, %s225
      %s227 = sphi 0, %s225
      %s228 = sphi 0, %s227
      %s242 = sphi 0, %s228
      %s246 = sphi 0, %s246
      %s248 = sphi 0, %s246
      %s249 = sphi 0, %s248
      %s263 = sphi 0, %s249
      %s267 = sphi 0, %s267
      %s269 = sphi 0, %s267
      %s270 = sphi 0, %s269
      %s284 = sphi 0, %s270
      %s288 = sphi 0, %s288
      %s290 = sphi 0, %s288
      %s291 = sphi 0, %s290
      %s305 = sphi 0, %s291
      %s309 = sphi 0, %s309
      %s311 = sphi 0, %s309
      %s312 = sphi 0, %s311
      %s326 = sphi 0, %s312
      %s334 = sphi 0, %s336
      %s337 = sphi 0, %s334
      %s338 = sphi 0, %s337
      %s354 = sphi 0, %s338
    $region4: #{tpu_custom_call.1} parent=1 // loop_header_branch
      %37 = sbr.rel (%p35) target = $region8
    $region5: #{tpu_custom_call.1} parent=1 // loop_body
      %s39 = ssub.s32 %s34, 1
      %s40 = ssub.s32 %s34, 2
      %s47 = sadd.s32 1, %s42
      %p48 = scmp.ge.s32.totalorder %s47, 1
      %s49 = scalar_select %p48, 0, %s47
      %s50 = sadd.s32 1, %s41
      %s51 = scalar_select %p48, %s50, %s41
      %p52 = scmp.ge.s32.totalorder %s51, 2
      %s53 = scalar_select %p52, 0, %s51
      %s54 = ssub.s32 %s41, %s53
      %s55 = ssub.s32 %s42, %s49
      %s56 = sor.u32 %s54, %s55
      %p57 = scmp.eq.s32.totalorder %s56, 0
      %s59 = sadd.s32 %s58, 1
      %s60 = scalar_select %p57, %s58, %s59
      %p63 = pneg %p57
      %p64 = scmp.eq.s32.totalorder %s34, 1
      %p65 = por %p63, %p64
      %p66 = scmp.ne.s32.totalorder %s58, %s61
      %p67 = scmp.eq.s32.totalorder %s34, 0
      %p68 = por %p66, %p67
      %p69 = scmp.ne.s32.totalorder %s58, %s61
      %p70 = scmp.eq.s32.totalorder %s39, 1
      %p71 = por %p69, %p70
      %p72 = scmp.ne.s32.totalorder %s61, %s62
      %p73 = scmp.eq.s32.totalorder %s39, 0
      %p74 = por %p72, %p73
      %p75 = scmp.ne.s32.totalorder %s61, %s62
      %p76 = scmp.eq.s32.totalorder %s40, 1
      %p77 = por %p75, %p76
      %p79 = scmp.ne.s32.totalorder %s62, %s78
      %p80 = scmp.eq.s32.totalorder %s40, 0
      %p81 = por %p79, %p80
      %s82 = ssub.s32 %s41, %s53
      %p83 = scmp.eq.s32.totalorder %s82, 0
      %s85 = sadd.s32 %s84, 1
      %s86 = scalar_select %p83, %s84, %s85
      %p89 = pneg %p83
      %p90 = scmp.eq.s32.totalorder %s34, 1
      %p91 = por %p89, %p90
      %p92 = scmp.ne.s32.totalorder %s84, %s87
      %p93 = scmp.eq.s32.totalorder %s34, 0
      %p94 = por %p92, %p93
      %p95 = scmp.ne.s32.totalorder %s84, %s87
      %p96 = scmp.eq.s32.totalorder %s39, 1
      %p97 = por %p95, %p96
      %p98 = scmp.ne.s32.totalorder %s87, %s88
      %p99 = scmp.eq.s32.totalorder %s39, 0
      %p100 = por %p98, %p99
      %p101 = scmp.ne.s32.totalorder %s87, %s88
      %p102 = scmp.eq.s32.totalorder %s40, 1
      %p103 = por %p101, %p102
      %p105 = scmp.ne.s32.totalorder %s88, %s104
      %p106 = scmp.eq.s32.totalorder %s40, 0
      %p107 = por %p105, %p106
      %s108 = ssub.s32 %s41, %s53
      %p109 = scmp.eq.s32.totalorder %s108, 0
      %s111 = sadd.s32 %s110, 1
      %s112 = scalar_select %p109, %s110, %s111
      %p115 = pneg %p109
      %p116 = scmp.eq.s32.totalorder %s34, 1
      %p117 = por %p115, %p116
      %p118 = scmp.ne.s32.totalorder %s110, %s113
      %p119 = scmp.eq.s32.totalorder %s34, 0
      %p120 = por %p118, %p119
      %p121 = scmp.ne.s32.totalorder %s110, %s113
      %p122 = scmp.eq.s32.totalorder %s39, 1
      %p123 = por %p121, %p122
      %p124 = scmp.ne.s32.totalorder %s113, %s114
      %p125 = scmp.eq.s32.totalorder %s39, 0
      %p126 = por %p124, %p125
      %p127 = scmp.ne.s32.totalorder %s113, %s114
      %p128 = scmp.eq.s32.totalorder %s40, 1
      %p129 = por %p127, %p128
      %p131 = scmp.ne.s32.totalorder %s114, %s130
      %p132 = scmp.eq.s32.totalorder %s40, 0
      %p133 = por %p131, %p132
      %s134 = ssub.s32 %s41, %s53
      %s135 = ssub.s32 %s42, %s49
      %s136 = sor.u32 %s134, %s135
      %p137 = scmp.eq.s32.totalorder %s136, 0
      %s139 = sadd.s32 %s138, 1
      %s140 = scalar_select %p137, %s138, %s139
      %p143 = pneg %p137
      %p144 = scmp.eq.s32.totalorder %s34, 1
      %p145 = por %p143, %p144
      %p146 = scmp.ne.s32.totalorder %s138, %s141
      %p147 = scmp.eq.s32.totalorder %s34, 0
      %p148 = por %p146, %p147
      %p149 = scmp.ne.s32.totalorder %s138, %s141
      %p150 = scmp.eq.s32.totalorder %s39, 1
      %p151 = por %p149, %p150
      %p152 = scmp.ne.s32.totalorder %s141, %s142
      %p153 = scmp.eq.s32.totalorder %s39, 0
      %p154 = por %p152, %p153
      %p155 = scmp.ne.s32.totalorder %s141, %s142
      %p156 = scmp.eq.s32.totalorder %s40, 1
      %p157 = por %p155, %p156
      %p159 = scmp.ne.s32.totalorder %s142, %s158
      %p160 = scmp.eq.s32.totalorder %s40, 0
      %p161 = por %p159, %p160
      %s163 = sadd.s32 %s162, 1
      %p166 = scmp.eq.s32.totalorder %s34, 1
      %p167 = scmp.ne.s32.totalorder %s162, %s164
      %p168 = scmp.eq.s32.totalorder %s34, 0
      %p169 = por %p167, %p168
      %p170 = scmp.ne.s32.totalorder %s162, %s164
      %p171 = scmp.eq.s32.totalorder %s39, 1
      %p172 = por %p170, %p171
      %p173 = scmp.ne.s32.totalorder %s164, %s165
      %p174 = scmp.eq.s32.totalorder %s39, 0
      %p175 = por %p173, %p174
      %p176 = scmp.ne.s32.totalorder %s164, %s165
      %p177 = scmp.eq.s32.totalorder %s40, 1
      %p178 = por %p176, %p177
      %p180 = scmp.ne.s32.totalorder %s165, %s179
      %p181 = scmp.eq.s32.totalorder %s40, 0
      %p182 = por %p180, %p181
      %s184 = sadd.s32 %s183, 1
      %p187 = scmp.eq.s32.totalorder %s34, 1
      %p188 = scmp.ne.s32.totalorder %s183, %s185
      %p189 = scmp.eq.s32.totalorder %s34, 0
      %p190 = por %p188, %p189
      %p191 = scmp.ne.s32.totalorder %s183, %s185
      %p192 = scmp.eq.s32.totalorder %s39, 1
      %p193 = por %p191, %p192
      %p194 = scmp.ne.s32.totalorder %s185, %s186
      %p195 = scmp.eq.s32.totalorder %s39, 0
      %p196 = por %p194, %p195
      %p197 = scmp.ne.s32.totalorder %s185, %s186
      %p198 = scmp.eq.s32.totalorder %s40, 1
      %p199 = por %p197, %p198
      %p201 = scmp.ne.s32.totalorder %s186, %s200
      %p202 = scmp.eq.s32.totalorder %s40, 0
      %p203 = por %p201, %p202
      %s205 = sadd.s32 %s204, 1
      %p208 = scmp.eq.s32.totalorder %s34, 1
      %p209 = scmp.ne.s32.totalorder %s204, %s206
      %p210 = scmp.eq.s32.totalorder %s34, 0
      %p211 = por %p209, %p210
      %p212 = scmp.ne.s32.totalorder %s204, %s206
      %p213 = scmp.eq.s32.totalorder %s39, 1
      %p214 = por %p212, %p213
      %p215 = scmp.ne.s32.totalorder %s206, %s207
      %p216 = scmp.eq.s32.totalorder %s39, 0
      %p217 = por %p215, %p216
      %p218 = scmp.ne.s32.totalorder %s206, %s207
      %p219 = scmp.eq.s32.totalorder %s40, 1
      %p220 = por %p218, %p219
      %p222 = scmp.ne.s32.totalorder %s207, %s221
      %p223 = scmp.eq.s32.totalorder %s40, 0
      %p224 = por %p222, %p223
      %s226 = sadd.s32 %s225, 1
      %p229 = scmp.eq.s32.totalorder %s34, 1
      %p230 = scmp.ne.s32.totalorder %s225, %s227
      %p231 = scmp.eq.s32.totalorder %s34, 0
      %p232 = por %p230, %p231
      %p233 = scmp.ne.s32.totalorder %s225, %s227
      %p234 = scmp.eq.s32.totalorder %s39, 1
      %p235 = por %p233, %p234
      %p236 = scmp.ne.s32.totalorder %s227, %s228
      %p237 = scmp.eq.s32.totalorder %s39, 0
      %p238 = por %p236, %p237
      %p239 = scmp.ne.s32.totalorder %s227, %s228
      %p240 = scmp.eq.s32.totalorder %s40, 1
      %p241 = por %p239, %p240
      %p243 = scmp.ne.s32.totalorder %s228, %s242
      %p244 = scmp.eq.s32.totalorder %s40, 0
      %p245 = por %p243, %p244
      %s247 = sadd.s32 %s246, 1
      %p250 = scmp.eq.s32.totalorder %s34, 1
      %p251 = scmp.ne.s32.totalorder %s246, %s248
      %p252 = scmp.eq.s32.totalorder %s34, 0
      %p253 = por %p251, %p252
      %p254 = scmp.ne.s32.totalorder %s246, %s248
      %p255 = scmp.eq.s32.totalorder %s39, 1
      %p256 = por %p254, %p255
      %p257 = scmp.ne.s32.totalorder %s248, %s249
      %p258 = scmp.eq.s32.totalorder %s39, 0
      %p259 = por %p257, %p258
      %p260 = scmp.ne.s32.totalorder %s248, %s249
      %p261 = scmp.eq.s32.totalorder %s40, 1
      %p262 = por %p260, %p261
      %p264 = scmp.ne.s32.totalorder %s249, %s263
      %p265 = scmp.eq.s32.totalorder %s40, 0
      %p266 = por %p264, %p265
      %s268 = sadd.s32 %s267, 1
      %p271 = scmp.eq.s32.totalorder %s34, 1
      %p272 = scmp.ne.s32.totalorder %s267, %s269
      %p273 = scmp.eq.s32.totalorder %s34, 0
      %p274 = por %p272, %p273
      %p275 = scmp.ne.s32.totalorder %s267, %s269
      %p276 = scmp.eq.s32.totalorder %s39, 1
      %p277 = por %p275, %p276
      %p278 = scmp.ne.s32.totalorder %s269, %s270
      %p279 = scmp.eq.s32.totalorder %s39, 0
      %p280 = por %p278, %p279
      %p281 = scmp.ne.s32.totalorder %s269, %s270
      %p282 = scmp.eq.s32.totalorder %s40, 1
      %p283 = por %p281, %p282
      %p285 = scmp.ne.s32.totalorder %s270, %s284
      %p286 = scmp.eq.s32.totalorder %s40, 0
      %p287 = por %p285, %p286
      %s289 = sadd.s32 %s288, 1
      %p292 = scmp.eq.s32.totalorder %s34, 1
      %p293 = scmp.ne.s32.totalorder %s288, %s290
      %p294 = scmp.eq.s32.totalorder %s34, 0
      %p295 = por %p293, %p294
      %p296 = scmp.ne.s32.totalorder %s288, %s290
      %p297 = scmp.eq.s32.totalorder %s39, 1
      %p298 = por %p296, %p297
      %p299 = scmp.ne.s32.totalorder %s290, %s291
      %p300 = scmp.eq.s32.totalorder %s39, 0
      %p301 = por %p299, %p300
      %p302 = scmp.ne.s32.totalorder %s290, %s291
      %p303 = scmp.eq.s32.totalorder %s40, 1
      %p304 = por %p302, %p303
      %p306 = scmp.ne.s32.totalorder %s291, %s305
      %p307 = scmp.eq.s32.totalorder %s40, 0
      %p308 = por %p306, %p307
      %s310 = sadd.s32 %s309, 1
      %p313 = scmp.eq.s32.totalorder %s34, 1
      %p314 = scmp.ne.s32.totalorder %s309, %s311
      %p315 = scmp.eq.s32.totalorder %s34, 0
      %p316 = por %p314, %p315
      %p317 = scmp.ne.s32.totalorder %s309, %s311
      %p318 = scmp.eq.s32.totalorder %s39, 1
      %p319 = por %p317, %p318
      %p320 = scmp.ne.s32.totalorder %s311, %s312
      %p321 = scmp.eq.s32.totalorder %s39, 0
      %p322 = por %p320, %p321
      %p323 = scmp.ne.s32.totalorder %s311, %s312
      %p324 = scmp.eq.s32.totalorder %s40, 1
      %p325 = por %p323, %p324
      %p327 = scmp.ne.s32.totalorder %s312, %s326
      %p328 = scmp.eq.s32.totalorder %s40, 0
      %p329 = por %p327, %p328
      %s330 = ssub.s32 %s41, %s53
      %s331 = ssub.s32 %s42, %s49
      %s332 = sor.u32 %s330, %s331
      %p333 = scmp.eq.s32.totalorder %s332, 0
      %s335 = sadd.s32 %s334, 1
      %s336 = scalar_select %p333, %s334, %s335
      %p339 = pneg %p333
      %p340 = scmp.eq.s32.totalorder %s34, 1
      %p341 = por %p339, %p340
      %p342 = scmp.ne.s32.totalorder %s334, %s337
      %p343 = scmp.eq.s32.totalorder %s34, 0
      %p344 = por %p342, %p343
      %p345 = scmp.ne.s32.totalorder %s334, %s337
      %p346 = scmp.eq.s32.totalorder %s39, 1
      %p347 = por %p345, %p346
      %p348 = scmp.ne.s32.totalorder %s337, %s338
      %p349 = scmp.eq.s32.totalorder %s39, 0
      %p350 = por %p348, %p349
      %p351 = scmp.ne.s32.totalorder %s337, %s338
      %p352 = scmp.eq.s32.totalorder %s40, 1
      %p353 = por %p351, %p352
      %p355 = scmp.ne.s32.totalorder %s338, %s354
      %p356 = scmp.eq.s32.totalorder %s40, 0
      %p357 = por %p355, %p356
      %p358 = scmp.le.s32.totalorder 1, %s34
      %p359 = scmp.lt.s32.totalorder %s34, 3
      %p360 = pnand %p358, %p359
      %p361 = pneg %p360
      // Predicated region
      $region9: #{tpu_custom_call.1} parent=5 // pred_check
        _
      $region10: #{tpu_custom_call.1} parent=5 // pred_check_branch
        %363 = sbr.rel (%p360) target = $region12
      $region11: #{tpu_custom_call.1} parent=5 // pred_region
        %s364 = ssub.s32 %s34, 1
        // Predicated region
        $region13: #{tpu_custom_call.1} parent=11 // pred_check
          %p365 = pneg %p175
        $region14: #{tpu_custom_call.1} parent=11 // pred_check_branch
          %367 = sbr.rel (%p365) target = $region16
        $region15: #{tpu_custom_call.1} parent=11 // pred_region
          %s369 = ssub.s32 256, 256
          %370 = vsyncadd [#allocation9], %s369
          %s371 = sshll.u32 [#allocation10], 4
          %s372 = int_to_ptr.vmem [resolvable:$true] %s371
          %377 = dma.hbm_to_vmem [thread:$0]  %s4, 256, %s372, [#allocation9], 64, 64, 4
        $region16: #{tpu_custom_call.1} parent=11 // pred_fallthru
          _
        // Predicated region
        $region17: #{tpu_custom_call.1} parent=11 // pred_check
          %p378 = pneg %p196
        $region18: #{tpu_custom_call.1} parent=11 // pred_check_branch
          %380 = sbr.rel (%p378) target = $region20
        $region19: #{tpu_custom_call.1} parent=11 // pred_region
          %s382 = ssub.s32 256, 256
          %383 = vsyncadd [#allocation12], %s382
          %s384 = sshll.u32 [#allocation11], 4
          %s385 = int_to_ptr.vmem [resolvable:$true] %s384
          %390 = dma.hbm_to_vmem [thread:$0]  %s5, 256, %s385, [#allocation12], 64, 64, 4
        $region20: #{tpu_custom_call.1} parent=11 // pred_fallthru
          _
        // Predicated region
        $region21: #{tpu_custom_call.1} parent=11 // pred_check
          %p391 = pneg %p217
        $region22: #{tpu_custom_call.1} parent=11 // pred_check_branch
          %393 = sbr.rel (%p391) target = $region24
        $region23: #{tpu_custom_call.1} parent=11 // pred_region
          %s395 = ssub.s32 256, 256
          %396 = vsyncadd [#allocation12], %s395
          %s397 = sshll.u32 [#allocation13], 4
          %s398 = int_to_ptr.vmem [resolvable:$true] %s397
          %403 = dma.hbm_to_vmem [thread:$0]  %s6, 256, %s398, [#allocation12], 64, 64, 4
        $region24: #{tpu_custom_call.1} parent=11 // pred_fallthru
          _
        // Predicated region
        $region25: #{tpu_custom_call.1} parent=11 // pred_check
          %p404 = pneg %p238
        $region26: #{tpu_custom_call.1} parent=11 // pred_check_branch
          %406 = sbr.rel (%p404) target = $region28
        $region27: #{tpu_custom_call.1} parent=11 // pred_region
          %s408 = ssub.s32 256, 256
          %409 = vsyncadd [#allocation15], %s408
          %s410 = sshll.u32 [#allocation14], 4
          %s411 = int_to_ptr.vmem [resolvable:$true] %s410
          %416 = dma.hbm_to_vmem [thread:$0]  %s7, 256, %s411, [#allocation15], 64, 64, 4
        $region28: #{tpu_custom_call.1} parent=11 // pred_fallthru
          _
        // Predicated region
        $region29: #{tpu_custom_call.1} parent=11 // pred_check
          %p417 = pneg %p259
        $region30: #{tpu_custom_call.1} parent=11 // pred_check_branch
          %419 = sbr.rel (%p417) target = $region32
        $region31: #{tpu_custom_call.1} parent=11 // pred_region
          %s421 = ssub.s32 16, 16
          %422 = vsyncadd [#allocation15], %s421
          %s424 = sshll.u32 [#allocation16], 4
          %s425 = int_to_ptr.vmem [resolvable:$true] %s424
          %427 = dma.hbm_to_vmem [thread:$0]  %s8, 16, %s425, [#allocation15]
        $region32: #{tpu_custom_call.1} parent=11 // pred_fallthru
          _
        // Predicated region
        $region33: #{tpu_custom_call.1} parent=11 // pred_check
          %p428 = pneg %p280
        $region34: #{tpu_custom_call.1} parent=11 // pred_check_branch
          %430 = sbr.rel (%p428) target = $region36
        $region35: #{tpu_custom_call.1} parent=11 // pred_region
          %s432 = ssub.s32 16, 16
          %433 = vsyncadd [#allocation18], %s432
          %s435 = sshll.u32 [#allocation17], 4
          %s436 = int_to_ptr.vmem [resolvable:$true] %s435
          %438 = dma.hbm_to_vmem [thread:$0]  %s9, 16, %s436, [#allocation18]
        $region36: #{tpu_custom_call.1} parent=11 // pred_fallthru
          _
        // Predicated region
        $region37: #{tpu_custom_call.1} parent=11 // pred_check
          %p439 = pneg %p301
        $region38: #{tpu_custom_call.1} parent=11 // pred_check_branch
          %441 = sbr.rel (%p439) target = $region40
        $region39: #{tpu_custom_call.1} parent=11 // pred_region
          %s443 = ssub.s32 16, 16
          %444 = vsyncadd [#allocation18], %s443
          %s446 = sshll.u32 [#allocation19], 4
          %s447 = int_to_ptr.vmem [resolvable:$true] %s446
          %449 = dma.hbm_to_vmem [thread:$0]  %s10, 16, %s447, [#allocation18]
        $region40: #{tpu_custom_call.1} parent=11 // pred_fallthru
          _
        // Predicated region
        $region41: #{tpu_custom_call.1} parent=11 // pred_check
          %p450 = pneg %p322
        $region42: #{tpu_custom_call.1} parent=11 // pred_check_branch
          %452 = sbr.rel (%p450) target = $region44
        $region43: #{tpu_custom_call.1} parent=11 // pred_region
          %s454 = ssub.s32 16, 16
          %455 = vsyncadd [#allocation21], %s454
          %s457 = sshll.u32 [#allocation20], 4
          %s458 = int_to_ptr.vmem [resolvable:$true] %s457
          %460 = dma.hbm_to_vmem [thread:$0]  %s11, 16, %s458, [#allocation21]
        $region44: #{tpu_custom_call.1} parent=11 // pred_fallthru
          _
      $region12: #{tpu_custom_call.1} parent=5 // pred_fallthru
        _
      %p461 = scmp.lt.s32.totalorder %s34, 2
      // Predicated region
      $region45: #{tpu_custom_call.1} parent=5 // pred_check
        %p462 = pneg %p461
      $region46: #{tpu_custom_call.1} parent=5 // pred_check_branch
        %464 = sbr.rel (%p462) target = $region48
      $region47: #{tpu_custom_call.1} parent=5 // pred_region
        // Predicated region
        $region49: #{tpu_custom_call.1} parent=47 // pred_check
          %p465 = pneg %p68
        $region50: #{tpu_custom_call.1} parent=47 // pred_check_branch
          %467 = sbr.rel (%p465) target = $region52
        $region51: #{tpu_custom_call.1} parent=47 // pred_region
          %s468 = sand.u32 %s58, 1
          %s469 = scalar_lea.sflag [#allocation3], %s468
          %s470 = sand.u32 %s58, 1
          %s471 = smul.addr %s470, 4
          %s472 = scalar_lea.vmem [#allocation2], %s471
          %s474 = ssub.s32 64, 64
          %475 = vsyncadd %s469, %s474
          %s476 = sadd.s32 %s42, %s41
          %s477 = smul.addr %s476, 64
          %s478 = scalar_lea.hbm %s0, %s477
          %s480 = sshll.u32 %s472, 4
          %s481 = int_to_ptr.vmem [resolvable:$true] %s480
          %483 = dma.hbm_to_vmem [thread:$0]  %s478, 64, %s481, %s469
        $region52: #{tpu_custom_call.1} parent=47 // pred_fallthru
          _
        // Predicated region
        $region53: #{tpu_custom_call.1} parent=47 // pred_check
          %p484 = pneg %p94
        $region54: #{tpu_custom_call.1} parent=47 // pred_check_branch
          %486 = sbr.rel (%p484) target = $region56
        $region55: #{tpu_custom_call.1} parent=47 // pred_region
          %s487 = sand.u32 %s34, 1
          %s488 = scalar_lea.sflag [#allocation6], %s487
          %s489 = sand.u32 %s84, 1
          %s490 = smul.addr %s489, 4
          %s491 = scalar_lea.vmem [#allocation5], %s490
          %s493 = ssub.s32 64, 64
          %494 = vsyncadd %s488, %s493
          %s495 = smul.addr %s41, 64
          %s496 = scalar_lea.hbm %s1, %s495
          %s498 = sshll.u32 %s491, 4
          %s499 = int_to_ptr.vmem [resolvable:$true] %s498
          %501 = dma.hbm_to_vmem [thread:$0]  %s496, 64, %s499, %s488
        $region56: #{tpu_custom_call.1} parent=47 // pred_fallthru
          _
        // Predicated region
        $region57: #{tpu_custom_call.1} parent=47 // pred_check
          %p502 = pneg %p120
        $region58: #{tpu_custom_call.1} parent=47 // pred_check_branch
          %504 = sbr.rel (%p502) target = $region60
        $region59: #{tpu_custom_call.1} parent=47 // pred_region
          %s505 = sand.u32 %s34, 1
          %s506 = scalar_lea.sflag [#allocation6], %s505
          %s507 = sand.u32 %s110, 1
          %s508 = smul.addr %s507, 4
          %s509 = scalar_lea.vmem [#allocation7], %s508
          %s511 = ssub.s32 64, 64
          %512 = vsyncadd %s506, %s511
          %s513 = smul.addr %s41, 64
          %s514 = scalar_lea.hbm %s2, %s513
          %s516 = sshll.u32 %s509, 4
          %s517 = int_to_ptr.vmem [resolvable:$true] %s516
          %519 = dma.hbm_to_vmem [thread:$0]  %s514, 64, %s517, %s506
        $region60: #{tpu_custom_call.1} parent=47 // pred_fallthru
          _
        // Predicated region
        $region61: #{tpu_custom_call.1} parent=47 // pred_check
          %p520 = pneg %p148
        $region62: #{tpu_custom_call.1} parent=47 // pred_check_branch
          %522 = sbr.rel (%p520) target = $region64
        $region63: #{tpu_custom_call.1} parent=47 // pred_region
          %s523 = sand.u32 %s34, 1
          %s524 = scalar_lea.sflag [#allocation9], %s523
          %s525 = sand.u32 %s138, 1
          %s526 = smul.addr %s525, 2
          %s527 = scalar_lea.vmem [#allocation8], %s526
          %s529 = ssub.s32 32, 32
          %530 = vsyncadd %s524, %s529
          %s531 = sadd.s32 %s42, %s41
          %s532 = smul.addr %s531, 32
          %s533 = scalar_lea.hbm %s3, %s532
          %s535 = sshll.u32 %s527, 4
          %s536 = int_to_ptr.vmem [resolvable:$true] %s535
          %538 = dma.hbm_to_vmem [thread:$0]  %s533, 32, %s536, %s524
        $region64: #{tpu_custom_call.1} parent=47 // pred_fallthru
          _
      $region48: #{tpu_custom_call.1} parent=5 // pred_fallthru
        _
      %p539 = scmp.le.s32.totalorder 1, %s34
      %p540 = scmp.lt.s32.totalorder %s34, 3
      %p541 = pnand %p539, %p540
      %p542 = pneg %p541
      // Predicated region
      $region65: #{tpu_custom_call.1} parent=5 // pred_check
        _
      $region66: #{tpu_custom_call.1} parent=5 // pred_check_branch
        %544 = sbr.rel (%p541) target = $region68
      $region67: #{tpu_custom_call.1} parent=5 // pred_region
        %s545 = ssub.s32 %s34, 1
        %s546 = sand.u32 %s61, 1
        %s547 = scalar_lea.sflag [#allocation3], %s546
        %s548 = sand.u32 %s61, 1
        %s549 = smul.addr %s548, 4
        %s550 = scalar_lea.vmem [#allocation2], %s549
        // Predicated region
        $region69: #{tpu_custom_call.1} parent=67 // pred_check
          %p551 = pneg %p74
        $region70: #{tpu_custom_call.1} parent=67 // pred_check_branch
          %553 = sbr.rel (%p551) target = $region72
        $region71: #{tpu_custom_call.1} parent=67 // pred_region
          %554 = dma.done %s547, 64
        $region72: #{tpu_custom_call.1} parent=67 // pred_fallthru
          _
        %s555 = sand.u32 %s39, 1
        %s556 = scalar_lea.sflag [#allocation6], %s555
        %s557 = sand.u32 %s87, 1
        %s558 = smul.addr %s557, 4
        %s559 = scalar_lea.vmem [#allocation5], %s558
        // Predicated region
        $region73: #{tpu_custom_call.1} parent=67 // pred_check
          %p560 = pneg %p100
        $region74: #{tpu_custom_call.1} parent=67 // pred_check_branch
          %562 = sbr.rel (%p560) target = $region76
        $region75: #{tpu_custom_call.1} parent=67 // pred_region
          %563 = dma.done %s556, 64
        $region76: #{tpu_custom_call.1} parent=67 // pred_fallthru
          _
        %s564 = sand.u32 %s39, 1
        %s565 = scalar_lea.sflag [#allocation6], %s564
        %s566 = sand.u32 %s113, 1
        %s567 = smul.addr %s566, 4
        %s568 = scalar_lea.vmem [#allocation7], %s567
        // Predicated region
        $region77: #{tpu_custom_call.1} parent=67 // pred_check
          %p569 = pneg %p126
        $region78: #{tpu_custom_call.1} parent=67 // pred_check_branch
          %571 = sbr.rel (%p569) target = $region80
        $region79: #{tpu_custom_call.1} parent=67 // pred_region
          %572 = dma.done %s565, 64
        $region80: #{tpu_custom_call.1} parent=67 // pred_fallthru
          _
        %s573 = sand.u32 %s39, 1
        %s574 = scalar_lea.sflag [#allocation9], %s573
        %s575 = sand.u32 %s141, 1
        %s576 = smul.addr %s575, 2
        %s577 = scalar_lea.vmem [#allocation8], %s576
        // Predicated region
        $region81: #{tpu_custom_call.1} parent=67 // pred_check
          %p578 = pneg %p154
        $region82: #{tpu_custom_call.1} parent=67 // pred_check_branch
          %580 = sbr.rel (%p578) target = $region84
        $region83: #{tpu_custom_call.1} parent=67 // pred_region
          %581 = dma.done %s574, 32
        $region84: #{tpu_custom_call.1} parent=67 // pred_fallthru
          _
        // Predicated region
        $region85: #{tpu_custom_call.1} parent=67 // pred_check
          %p582 = pneg %p175
        $region86: #{tpu_custom_call.1} parent=67 // pred_check_branch
          %584 = sbr.rel (%p582) target = $region88
        $region87: #{tpu_custom_call.1} parent=67 // pred_region
          %585 = dma.done [#allocation9], 256
        $region88: #{tpu_custom_call.1} parent=67 // pred_fallthru
          _
        // Predicated region
        $region89: #{tpu_custom_call.1} parent=67 // pred_check
          %p586 = pneg %p196
        $region90: #{tpu_custom_call.1} parent=67 // pred_check_branch
          %588 = sbr.rel (%p586) target = $region92
        $region91: #{tpu_custom_call.1} parent=67 // pred_region
          %589 = dma.done [#allocation12], 256
        $region92: #{tpu_custom_call.1} parent=67 // pred_fallthru
          _
        // Predicated region
        $region93: #{tpu_custom_call.1} parent=67 // pred_check
          %p590 = pneg %p217
        $region94: #{tpu_custom_call.1} parent=67 // pred_check_branch
          %592 = sbr.rel (%p590) target = $region96
        $region95: #{tpu_custom_call.1} parent=67 // pred_region
          %593 = dma.done [#allocation12], 256
        $region96: #{tpu_custom_call.1} parent=67 // pred_fallthru
          _
        // Predicated region
        $region97: #{tpu_custom_call.1} parent=67 // pred_check
          %p594 = pneg %p238
        $region98: #{tpu_custom_call.1} parent=67 // pred_check_branch
          %596 = sbr.rel (%p594) target = $region100
        $region99: #{tpu_custom_call.1} parent=67 // pred_region
          %597 = dma.done [#allocation15], 256
        $region100: #{tpu_custom_call.1} parent=67 // pred_fallthru
          _
        // Predicated region
        $region101: #{tpu_custom_call.1} parent=67 // pred_check
          %p598 = pneg %p259
        $region102: #{tpu_custom_call.1} parent=67 // pred_check_branch
          %600 = sbr.rel (%p598) target = $region104
        $region103: #{tpu_custom_call.1} parent=67 // pred_region
          %601 = dma.done [#allocation15], 16
        $region104: #{tpu_custom_call.1} parent=67 // pred_fallthru
          _
        // Predicated region
        $region105: #{tpu_custom_call.1} parent=67 // pred_check
          %p602 = pneg %p280
        $region106: #{tpu_custom_call.1} parent=67 // pred_check_branch
          %604 = sbr.rel (%p602) target = $region108
        $region107: #{tpu_custom_call.1} parent=67 // pred_region
          %605 = dma.done [#allocation18], 16
        $region108: #{tpu_custom_call.1} parent=67 // pred_fallthru
          _
        // Predicated region
        $region109: #{tpu_custom_call.1} parent=67 // pred_check
          %p606 = pneg %p301
        $region110: #{tpu_custom_call.1} parent=67 // pred_check_branch
          %608 = sbr.rel (%p606) target = $region112
        $region111: #{tpu_custom_call.1} parent=67 // pred_region
          %609 = dma.done [#allocation18], 16
        $region112: #{tpu_custom_call.1} parent=67 // pred_fallthru
          _
        // Predicated region
        $region113: #{tpu_custom_call.1} parent=67 // pred_check
          %p610 = pneg %p322
        $region114: #{tpu_custom_call.1} parent=67 // pred_check_branch
          %612 = sbr.rel (%p610) target = $region116
        $region115: #{tpu_custom_call.1} parent=67 // pred_region
          %613 = dma.done [#allocation21], 16
        $region116: #{tpu_custom_call.1} parent=67 // pred_fallthru
          _
        %s614 = sand.u32 %s61, 1
        %s615 = scalar_lea.sflag [#allocation3], %s614
        %s616 = sand.u32 %s61, 1
        %s617 = smul.addr %s616, 4
        %s618 = scalar_lea.vmem [#allocation2], %s617
        %p619 = pneg %p74
        %p620 = pneg %p71
        %s621 = sand.u32 %s39, 1
        %s622 = scalar_lea.sflag [#allocation6], %s621
        %s623 = sand.u32 %s87, 1
        %s624 = smul.addr %s623, 4
        %s625 = scalar_lea.vmem [#allocation5], %s624
        %p626 = pneg %p100
        %p627 = pneg %p97
        %s628 = sand.u32 %s39, 1
        %s629 = scalar_lea.sflag [#allocation6], %s628
        %s630 = sand.u32 %s113, 1
        %s631 = smul.addr %s630, 4
        %s632 = scalar_lea.vmem [#allocation7], %s631
        %p633 = pneg %p126
        %p634 = pneg %p123
        %s635 = sand.u32 %s39, 1
        %s636 = scalar_lea.sflag [#allocation9], %s635
        %s637 = sand.u32 %s141, 1
        %s638 = smul.addr %s637, 2
        %s639 = scalar_lea.vmem [#allocation8], %s638
        %p640 = pneg %p154
        %p641 = pneg %p151
        %p642 = pneg %p175
        %p643 = pneg %p172
        %p644 = pneg %p196
        %p645 = pneg %p193
        %p646 = pneg %p217
        %p647 = pneg %p214
        %p648 = pneg %p238
        %p649 = pneg %p235
        %p650 = pneg %p259
        %p651 = pneg %p256
        %p652 = pneg %p280
        %p653 = pneg %p277
        %p654 = pneg %p301
        %p655 = pneg %p298
        %p656 = pneg %p322
        %p657 = pneg %p319
        %p658 = pneg %p350
        %p659 = pneg %p347
        %s660 = sand.u32 %s337, 1
        %s661 = scalar_lea.sflag [#allocation4], %s660
        %s662 = sand.u32 %s337, 1
        %s663 = smul.addr %s662, 8
        %s664 = scalar_lea.vmem [#allocation22], %s663
        %v666 = vld [vmem:[%s550] sm:$0xf]
        %v667 = vld [vmem:[#allocation10] sm:$0xf]
        %v668 = vld [vmem:[#allocation10 + $0x4] sm:$0xf]
        %v669 = vld [vmem:[#allocation10 + $0x8] sm:$0xf]
        %v670 = vld [vmem:[#allocation10 + $0xc] sm:$0xf]
        %v671 = vld [vmem:[#allocation16] sm:$0x1]
        %v673 = vlaneseq
        %v674 = vshrl.u32 %v673, 7
        %v675 = vsub.s32 0, %v674
        %v676 = vrot.slane %v671, %v675
        %v682 = vunpack.c.l.b16 %v667
        %v683 = vunpack.c.l.b16 %v668
        %v684 = vunpack.c.l.b16 %v669
        %v685 = vunpack.c.l.b16 %v670
        %v686 = vpack.c.b16 %v683, %v682
        %v687 = vpack.c.b16 %v685, %v684
        %vm690 = vcmask 261120
        %v692 = vsel %vm690, %v666, 0
        %694 = vmatprep.subr.bf16.mxu0 0
        %695 = vmatpush1.bf16.msra.mxu0 %v686
        %696 = vmatprep.subr.bf16.mxu0 0
        %697 = vmatpush1.bf16.msra.mxu0 %v687
        %698 = vmatprep.subr.bf16.mxu0 0
        %699 = vmatpush1.bf16.msra.mxu0 0
        %700 = vmatprep.subr.bf16.mxu0 0
        %701 = vmatpush1.bf16.msra.mxu0 0
        %702 = vmatprep.subr.bf16.mxu0 0
        %703 = vmatpush1.bf16.msra.mxu0 0
        %704 = vmatprep.subr.bf16.mxu0 0
        %705 = vmatpush1.bf16.msra.mxu0 0
        %706 = vmatprep.subr.bf16.mxu0 0
        %707 = vmatpush1.bf16.msra.mxu0 0
        %708 = vmatprep.subr.bf16.mxu0 0
        %709 = vmatpush1.bf16.msra.mxu0 0
        %710 = vmatprep.subr.bf16.mxu0 0
        %711 = vmatpush1.bf16.msra.mxu0 0
        %712 = vmatprep.subr.bf16.mxu0 0
        %713 = vmatpush1.bf16.msra.mxu0 0
        %714 = vmatprep.subr.bf16.mxu0 0
        %715 = vmatpush1.bf16.msra.mxu0 0
        %716 = vmatprep.subr.bf16.mxu0 0
        %717 = vmatpush1.bf16.msra.mxu0 0
        %718 = vmatprep.subr.bf16.mxu0 0
        %719 = vmatpush1.bf16.msra.mxu0 0
        %720 = vmatprep.subr.bf16.mxu0 0
        %721 = vmatpush1.bf16.msra.mxu0 0
        %722 = vmatprep.subr.bf16.mxu0 0
        %723 = vmatpush1.bf16.msra.mxu0 0
        %724 = vmatprep.subr.bf16.mxu0 0
        %725 = vmatpush1.bf16.msra.mxu0 0
        %726 = vmatprep.mubr.bf16.mxu0 0
        %727 = vmatmul.mubr.bf16.gmra.mrb[0].mxu0 %v692
        %v728 = vpop.f32.mrb[0].mxu0
        %v729 = vadd.f32 %v676, %v728
        %v730 = vpop.f32.mrb[0].mxu0
        %v731 = vpop.f32.mrb[0].mxu0
        %v732 = vpop.f32.mrb[0].mxu0
        %733 = vdwg.mxu0
        %v734 = vmul.f32 %v729, 0.35355338
        %v735 = vld [vmem:[%s559] sm:$0xf]
        %v736 = vld [vmem:[#allocation11] sm:$0xf]
        %v737 = vld [vmem:[#allocation11 + $0x4] sm:$0xf]
        %v738 = vld [vmem:[#allocation11 + $0x8] sm:$0xf]
        %v739 = vld [vmem:[#allocation11 + $0xc] sm:$0xf]
        %v740 = vld [vmem:[#allocation17] sm:$0x1]
        %v742 = vlaneseq
        %v743 = vshrl.u32 %v742, 7
        %v744 = vsub.s32 0, %v743
        %v745 = vrot.slane %v740, %v744
        %v751 = vunpack.c.l.b16 %v736
        %v752 = vunpack.c.l.b16 %v737
        %v753 = vunpack.c.l.b16 %v738
        %v754 = vunpack.c.l.b16 %v739
        %v755 = vpack.c.b16 %v752, %v751
        %v756 = vpack.c.b16 %v754, %v753
        %v760 = vsel %vm690, %v735, 0
        %762 = vmatprep.subr.bf16.mxu0 0
        %763 = vmatpush1.bf16.msra.mxu0 %v755
        %764 = vmatprep.subr.bf16.mxu0 0
        %765 = vmatpush1.bf16.msra.mxu0 %v756
        %766 = vmatprep.subr.bf16.mxu0 0
        %767 = vmatpush1.bf16.msra.mxu0 0
        %768 = vmatprep.subr.bf16.mxu0 0
        %769 = vmatpush1.bf16.msra.mxu0 0
        %770 = vmatprep.subr.bf16.mxu0 0
        %771 = vmatpush1.bf16.msra.mxu0 0
        %772 = vmatprep.subr.bf16.mxu0 0
        %773 = vmatpush1.bf16.msra.mxu0 0
        %774 = vmatprep.subr.bf16.mxu0 0
        %775 = vmatpush1.bf16.msra.mxu0 0
        %776 = vmatprep.subr.bf16.mxu0 0
        %777 = vmatpush1.bf16.msra.mxu0 0
        %778 = vmatprep.subr.bf16.mxu0 0
        %779 = vmatpush1.bf16.msra.mxu0 0
        %780 = vmatprep.subr.bf16.mxu0 0
        %781 = vmatpush1.bf16.msra.mxu0 0
        %782 = vmatprep.subr.bf16.mxu0 0
        %783 = vmatpush1.bf16.msra.mxu0 0
        %784 = vmatprep.subr.bf16.mxu0 0
        %785 = vmatpush1.bf16.msra.mxu0 0
        %786 = vmatprep.subr.bf16.mxu0 0
        %787 = vmatpush1.bf16.msra.mxu0 0
        %788 = vmatprep.subr.bf16.mxu0 0
        %789 = vmatpush1.bf16.msra.mxu0 0
        %790 = vmatprep.subr.bf16.mxu0 0
        %791 = vmatpush1.bf16.msra.mxu0 0
        %792 = vmatprep.subr.bf16.mxu0 0
        %793 = vmatpush1.bf16.msra.mxu0 0
        %794 = vmatprep.mubr.bf16.mxu0 0
        %795 = vmatmul.mubr.bf16.gmra.mrb[0].mxu0 %v760
        %v796 = vpop.f32.mrb[0].mxu0
        %v797 = vadd.f32 %v745, %v796
        %v798 = vpop.f32.mrb[0].mxu0
        %v799 = vpop.f32.mrb[0].mxu0
        %v800 = vpop.f32.mrb[0].mxu0
        %801 = vdwg.mxu0
        %v802 = vld [vmem:[%s568] sm:$0xf]
        %v803 = vld [vmem:[#allocation13] sm:$0xf]
        %v804 = vld [vmem:[#allocation13 + $0x4] sm:$0xf]
        %v805 = vld [vmem:[#allocation13 + $0x8] sm:$0xf]
        %v806 = vld [vmem:[#allocation13 + $0xc] sm:$0xf]
        %v807 = vld [vmem:[#allocation19] sm:$0x1]
        %v809 = vlaneseq
        %v810 = vshrl.u32 %v809, 7
        %v811 = vsub.s32 0, %v810
        %v812 = vrot.slane %v807, %v811
        %v818 = vunpack.c.l.b16 %v803
        %v819 = vunpack.c.l.b16 %v804
        %v820 = vunpack.c.l.b16 %v805
        %v821 = vunpack.c.l.b16 %v806
        %v822 = vpack.c.b16 %v819, %v818
        %v823 = vpack.c.b16 %v821, %v820
        %v827 = vsel %vm690, %v802, 0
        %829 = vmatprep.subr.bf16.mxu0 0
        %830 = vmatpush1.bf16.msra.mxu0 %v822
        %831 = vmatprep.subr.bf16.mxu0 0
        %832 = vmatpush1.bf16.msra.mxu0 %v823
        %833 = vmatprep.subr.bf16.mxu0 0
        %834 = vmatpush1.bf16.msra.mxu0 0
        %835 = vmatprep.subr.bf16.mxu0 0
        %836 = vmatpush1.bf16.msra.mxu0 0
        %837 = vmatprep.subr.bf16.mxu0 0
        %838 = vmatpush1.bf16.msra.mxu0 0
        %839 = vmatprep.subr.bf16.mxu0 0
        %840 = vmatpush1.bf16.msra.mxu0 0
        %841 = vmatprep.subr.bf16.mxu0 0
        %842 = vmatpush1.bf16.msra.mxu0 0
        %843 = vmatprep.subr.bf16.mxu0 0
        %844 = vmatpush1.bf16.msra.mxu0 0
        %845 = vmatprep.subr.bf16.mxu0 0
        %846 = vmatpush1.bf16.msra.mxu0 0
        %847 = vmatprep.subr.bf16.mxu0 0
        %848 = vmatpush1.bf16.msra.mxu0 0
        %849 = vmatprep.subr.bf16.mxu0 0
        %850 = vmatpush1.bf16.msra.mxu0 0
        %851 = vmatprep.subr.bf16.mxu0 0
        %852 = vmatpush1.bf16.msra.mxu0 0
        %853 = vmatprep.subr.bf16.mxu0 0
        %854 = vmatpush1.bf16.msra.mxu0 0
        %855 = vmatprep.subr.bf16.mxu0 0
        %856 = vmatpush1.bf16.msra.mxu0 0
        %857 = vmatprep.subr.bf16.mxu0 0
        %858 = vmatpush1.bf16.msra.mxu0 0
        %859 = vmatprep.subr.bf16.mxu0 0
        %860 = vmatpush1.bf16.msra.mxu0 0
        %861 = vmatprep.mubr.bf16.mxu0 0
        %862 = vmatmul.mubr.bf16.gmra.mrb[0].mxu0 %v827
        %v863 = vpop.f32.mrb[0].mxu0
        %v864 = vadd.f32 %v812, %v863
        %v865 = vpop.f32.mrb[0].mxu0
        %v866 = vpop.f32.mrb[0].mxu0
        %v867 = vpop.f32.mrb[0].mxu0
        %868 = vdwg.mxu0
        %v869 = vpack.c.bf16 %v734, %v734
        %v870 = vpack.c.bf16 %v797, %v797
        %v871 = vpack.c.bf16 %v864, %v864
        %v872 = vld [vmem:[%s577] sm:$0x3]
        %v873 = vunpack.c.0.s8 %v872
        %v874 = vcvt.s32.f32 %v873
        %vm875 = vcmp.eq.f32.partialorder %v874, 0.0
        %v876 = vsel %vm875, -1e+09, 0.0
        %v877 = vld [vmem:[#allocation14] sm:$0xf]
        %v878 = vld [vmem:[#allocation14 + $0x4] sm:$0xf]
        %v879 = vld [vmem:[#allocation14 + $0x8] sm:$0xf]
        %v880 = vld [vmem:[#allocation14 + $0xc] sm:$0xf]
        %vm881 = vcmask 64512
        %v883 = vsel %vm881, %v869, 0
        %v886 = vsel %vm881, %v870, 0
        %888 = vmatprep.subr.bf16.mxu0 0
        %889 = vmatpush1.bf16.xpose.msra.mxu0 %v886
        %890 = vmatprep.subr.bf16.mxu0 0
        %891 = vmatpush1.bf16.xpose.msra.mxu0 0
        %892 = vmatprep.subr.bf16.mxu0 0
        %893 = vmatpush1.bf16.xpose.msra.mxu0 0
        %894 = vmatprep.subr.bf16.mxu0 0
        %895 = vmatpush1.bf16.xpose.msra.mxu0 0
        %896 = vmatprep.subr.bf16.mxu0 0
        %897 = vmatpush1.bf16.xpose.msra.mxu0 0
        %898 = vmatprep.subr.bf16.mxu0 0
        %899 = vmatpush1.bf16.xpose.msra.mxu0 0
        %900 = vmatprep.subr.bf16.mxu0 0
        %901 = vmatpush1.bf16.xpose.msra.mxu0 0
        %902 = vmatprep.subr.bf16.mxu0 0
        %903 = vmatpush1.bf16.xpose.msra.mxu0 0
        %904 = vmatprep.subr.bf16.mxu0 0
        %905 = vmatpush1.bf16.xpose.msra.mxu0 0
        %906 = vmatprep.subr.bf16.mxu0 0
        %907 = vmatpush1.bf16.xpose.msra.mxu0 0
        %908 = vmatprep.subr.bf16.mxu0 0
        %909 = vmatpush1.bf16.xpose.msra.mxu0 0
        %910 = vmatprep.subr.bf16.mxu0 0
        %911 = vmatpush1.bf16.xpose.msra.mxu0 0
        %912 = vmatprep.subr.bf16.mxu0 0
        %913 = vmatpush1.bf16.xpose.msra.mxu0 0
        %914 = vmatprep.subr.bf16.mxu0 0
        %915 = vmatpush1.bf16.xpose.msra.mxu0 0
        %916 = vmatprep.subr.bf16.mxu0 0
        %917 = vmatpush1.bf16.xpose.msra.mxu0 0
        %918 = vmatprep.subr.bf16.mxu0 0
        %919 = vmatpush1.bf16.xpose.msra.mxu0 0
        %920 = vmatprep.mubr.bf16.mxu0 0
        %921 = vmatmul.mubr.bf16.gmra.mrb[0].mxu0 %v883
        %v922 = vpop.f32.mrb[0].mxu0
        %v923 = vadd.f32 %v876, %v922
        %v924 = vpop.f32.mrb[0].mxu0
        %v925 = vpop.f32.mrb[0].mxu0
        %v926 = vpop.f32.mrb[0].mxu0
        %927 = vdwg.mxu0
        %v928 = vsel %vm881, %v923, -inf
        %929 = vmax.xlane.f32.xlu0 %v928
        %v930 = vpop.xlane.xlu0 %929
        %v931 = vsub.f32 %v923, %v930
        %v932 = vmul.f32 %v931, 1.442695
        %v933 = vpow.pop %v932
        %v934 = vsel %vm881, %v933, 0.0
        %935 = vadd.xlane.f32.xlu0 %v934
        %v936 = vpop.xlane.xlu0 %935
        %v937 = vrcp.pop %v936
        %v938 = vmul.f32 %v933, %v937
        %v939 = vpack.c.bf16 %v938, %v938
        %v941 = vsel %vm881, %v939, 0
        %vm943 = vcmask 1043456
        %v945 = vsel %vm943, %v871, 0
        %947 = vmatprep.subr.bf16.mxu0 0
        %948 = vmatpush1.bf16.msra.mxu0 %v945
        %949 = vmatprep.subr.bf16.mxu0 0
        %950 = vmatpush1.bf16.msra.mxu0 0
        %951 = vmatprep.subr.bf16.mxu0 0
        %952 = vmatpush1.bf16.msra.mxu0 0
        %953 = vmatprep.subr.bf16.mxu0 0
        %954 = vmatpush1.bf16.msra.mxu0 0
        %955 = vmatprep.subr.bf16.mxu0 0
        %956 = vmatpush1.bf16.msra.mxu0 0
        %957 = vmatprep.subr.bf16.mxu0 0
        %958 = vmatpush1.bf16.msra.mxu0 0
        %959 = vmatprep.subr.bf16.mxu0 0
        %960 = vmatpush1.bf16.msra.mxu0 0
        %961 = vmatprep.subr.bf16.mxu0 0
        %962 = vmatpush1.bf16.msra.mxu0 0
        %963 = vmatprep.subr.bf16.mxu0 0
        %964 = vmatpush1.bf16.msra.mxu0 0
        %965 = vmatprep.subr.bf16.mxu0 0
        %966 = vmatpush1.bf16.msra.mxu0 0
        %967 = vmatprep.subr.bf16.mxu0 0
        %968 = vmatpush1.bf16.msra.mxu0 0
        %969 = vmatprep.subr.bf16.mxu0 0
        %970 = vmatpush1.bf16.msra.mxu0 0
        %971 = vmatprep.subr.bf16.mxu0 0
        %972 = vmatpush1.bf16.msra.mxu0 0
        %973 = vmatprep.subr.bf16.mxu0 0
        %974 = vmatpush1.bf16.msra.mxu0 0
        %975 = vmatprep.subr.bf16.mxu0 0
        %976 = vmatpush1.bf16.msra.mxu0 0
        %977 = vmatprep.subr.bf16.mxu0 0
        %978 = vmatpush1.bf16.msra.mxu0 0
        %979 = vmatprep.mubr.bf16.mxu0 0
        %980 = vmatmul.mubr.bf16.gmra.mrb[0].mxu0 %v941
        %v981 = vpop.f32.mrb[0].mxu0
        %v982 = vadd.f32 0.0, %v981
        %v983 = vpop.f32.mrb[0].mxu0
        %v984 = vpop.f32.mrb[0].mxu0
        %v985 = vpop.f32.mrb[0].mxu0
        %986 = vdwg.mxu0
        %v987 = vpack.c.bf16 %v982, %v982
        %989 = vrot.lane.b32.xlu0 %v869, 120
        %v990 = vpop.permute.xlu0 %989
        %992 = vrot.lane.b32.xlu0 %v870, 120
        %v993 = vpop.permute.xlu0 %992
        %v995 = vsel %vm881, %v990, 0
        %v998 = vsel %vm881, %v993, 0
        %1000 = vmatprep.subr.bf16.mxu0 0
        %1001 = vmatpush1.bf16.xpose.msra.mxu0 %v998
        %1002 = vmatprep.subr.bf16.mxu0 0
        %1003 = vmatpush1.bf16.xpose.msra.mxu0 0
        %1004 = vmatprep.subr.bf16.mxu0 0
        %1005 = vmatpush1.bf16.xpose.msra.mxu0 0
        %1006 = vmatprep.subr.bf16.mxu0 0
        %1007 = vmatpush1.bf16.xpose.msra.mxu0 0
        %1008 = vmatprep.subr.bf16.mxu0 0
        %1009 = vmatpush1.bf16.xpose.msra.mxu0 0
        %1010 = vmatprep.subr.bf16.mxu0 0
        %1011 = vmatpush1.bf16.xpose.msra.mxu0 0
        %1012 = vmatprep.subr.bf16.mxu0 0
        %1013 = vmatpush1.bf16.xpose.msra.mxu0 0
        %1014 = vmatprep.subr.bf16.mxu0 0
        %1015 = vmatpush1.bf16.xpose.msra.mxu0 0
        %1016 = vmatprep.subr.bf16.mxu0 0
        %1017 = vmatpush1.bf16.xpose.msra.mxu0 0
        %1018 = vmatprep.subr.bf16.mxu0 0
        %1019 = vmatpush1.bf16.xpose.msra.mxu0 0
        %1020 = vmatprep.subr.bf16.mxu0 0
        %1021 = vmatpush1.bf16.xpose.msra.mxu0 0
        %1022 = vmatprep.subr.bf16.mxu0 0
        %1023 = vmatpush1.bf16.xpose.msra.mxu0 0
        %1024 = vmatprep.subr.bf16.mxu0 0
        %1025 = vmatpush1.bf16.xpose.msra.mxu0 0
        %1026 = vmatprep.subr.bf16.mxu0 0
        %1027 = vmatpush1.bf16.xpose.msra.mxu0 0
        %1028 = vmatprep.subr.bf16.mxu0 0
        %1029 = vmatpush1.bf16.xpose.msra.mxu0 0
        %1030 = vmatprep.subr.bf16.mxu0 0
        %1031 = vmatpush1.bf16.xpose.msra.mxu0 0
        %1032 = vmatprep.mubr.bf16.mxu0 0
        %1033 = vmatmul.mubr.bf16.gmra.mrb[0].mxu0 %v995
        %v1034 = vpop.f32.mrb[0].mxu0
        %v1035 = vadd.f32 %v876, %v1034
        %v1036 = vpop.f32.mrb[0].mxu0
        %v1037 = vpop.f32.mrb[0].mxu0
        %v1038 = vpop.f32.mrb[0].mxu0
        %1039 = vdwg.mxu0
        %v1040 = vsel %vm881, %v1035, -inf
        %1041 = vmax.xlane.f32.xlu0 %v1040
        %v1042 = vpop.xlane.xlu0 %1041
        %v1043 = vsub.f32 %v1035, %v1042
        %v1044 = vmul.f32 %v1043, 1.442695
        %v1045 = vpow.pop %v1044
        %v1046 = vsel %vm881, %v1045, 0.0
        %1047 = vadd.xlane.f32.xlu0 %v1046
        %v1048 = vpop.xlane.xlu0 %1047
        %v1049 = vrcp.pop %v1048
        %v1050 = vmul.f32 %v1045, %v1049
        %v1051 = vpack.c.bf16 %v1050, %v1050
        %1053 = vrot.lane.b32.xlu0 %v871, 120
        %v1054 = vpop.permute.xlu0 %1053
        %v1056 = vsel %vm881, %v1051, 0
        %v1059 = vsel %vm943, %v1054, 0
        %1061 = vmatprep.subr.bf16.mxu0 0
        %1062 = vmatpush1.bf16.msra.mxu0 %v1059
        %1063 = vmatprep.subr.bf16.mxu0 0
        %1064 = vmatpush1.bf16.msra.mxu0 0
        %1065 = vmatprep.subr.bf16.mxu0 0
        %1066 = vmatpush1.bf16.msra.mxu0 0
        %1067 = vmatprep.subr.bf16.mxu0 0
        %1068 = vmatpush1.bf16.msra.mxu0 0
        %1069 = vmatprep.subr.bf16.mxu0 0
        %1070 = vmatpush1.bf16.msra.mxu0 0
        %1071 = vmatprep.subr.bf16.mxu0 0
        %1072 = vmatpush1.bf16.msra.mxu0 0
        %1073 = vmatprep.subr.bf16.mxu0 0
        %1074 = vmatpush1.bf16.msra.mxu0 0
        %1075 = vmatprep.subr.bf16.mxu0 0
        %1076 = vmatpush1.bf16.msra.mxu0 0
        %1077 = vmatprep.subr.bf16.mxu0 0
        %1078 = vmatpush1.bf16.msra.mxu0 0
        %1079 = vmatprep.subr.bf16.mxu0 0
        %1080 = vmatpush1.bf16.msra.mxu0 0
        %1081 = vmatprep.subr.bf16.mxu0 0
        %1082 = vmatpush1.bf16.msra.mxu0 0
        %1083 = vmatprep.subr.bf16.mxu0 0
        %1084 = vmatpush1.bf16.msra.mxu0 0
        %1085 = vmatprep.subr.bf16.mxu0 0
        %1086 = vmatpush1.bf16.msra.mxu0 0
        %1087 = vmatprep.subr.bf16.mxu0 0
        %1088 = vmatpush1.bf16.msra.mxu0 0
        %1089 = vmatprep.subr.bf16.mxu0 0
        %1090 = vmatpush1.bf16.msra.mxu0 0
        %1091 = vmatprep.subr.bf16.mxu0 0
        %1092 = vmatpush1.bf16.msra.mxu0 0
        %1093 = vmatprep.mubr.bf16.mxu0 0
        %1094 = vmatmul.mubr.bf16.gmra.mrb[0].mxu0 %v1056
        %v1095 = vpop.f32.mrb[0].mxu0
        %v1096 = vadd.f32 0.0, %v1095
        %v1097 = vpop.f32.mrb[0].mxu0
        %v1098 = vpop.f32.mrb[0].mxu0
        %v1099 = vpop.f32.mrb[0].mxu0
        %1100 = vdwg.mxu0
        %v1101 = vpack.c.bf16 %v1096, %v1096
        %v1103 = vsel %vm881, %v1101, 0
        %v1106 = vsel %vm943, %v878, 0
        %1108 = vmatprep.subr.bf16.mxu0 0
        %1109 = vmatpush1.bf16.msra.mxu0 %v1106
        %1110 = vmatprep.subr.bf16.mxu0 0
        %1111 = vmatpush1.bf16.msra.mxu0 0
        %1112 = vmatprep.subr.bf16.mxu0 0
        %1113 = vmatpush1.bf16.msra.mxu0 0
        %1114 = vmatprep.subr.bf16.mxu0 0
        %1115 = vmatpush1.bf16.msra.mxu0 0
        %1116 = vmatprep.subr.bf16.mxu0 0
        %1117 = vmatpush1.bf16.msra.mxu0 0
        %1118 = vmatprep.subr.bf16.mxu0 0
        %1119 = vmatpush1.bf16.msra.mxu0 0
        %1120 = vmatprep.subr.bf16.mxu0 0
        %1121 = vmatpush1.bf16.msra.mxu0 0
        %1122 = vmatprep.subr.bf16.mxu0 0
        %1123 = vmatpush1.bf16.msra.mxu0 0
        %1124 = vmatprep.subr.bf16.mxu0 0
        %1125 = vmatpush1.bf16.msra.mxu0 0
        %1126 = vmatprep.subr.bf16.mxu0 0
        %1127 = vmatpush1.bf16.msra.mxu0 0
        %1128 = vmatprep.subr.bf16.mxu0 0
        %1129 = vmatpush1.bf16.msra.mxu0 0
        %1130 = vmatprep.subr.bf16.mxu0 0
        %1131 = vmatpush1.bf16.msra.mxu0 0
        %1132 = vmatprep.subr.bf16.mxu0 0
        %1133 = vmatpush1.bf16.msra.mxu0 0
        %1134 = vmatprep.subr.bf16.mxu0 0
        %1135 = vmatpush1.bf16.msra.mxu0 0
        %1136 = vmatprep.subr.bf16.mxu0 0
        %1137 = vmatpush1.bf16.msra.mxu0 0
        %1138 = vmatprep.subr.bf16.mxu0 0
        %1139 = vmatpush1.bf16.msra.mxu0 0
        %1140 = vmatprep.mubr.bf16.mxu0 0
        %1141 = vmatmul.mubr.bf16.gmra.mrb[0].mxu0 %v1103
        %v1142 = vpop.f32.mrb[0].mxu0
        %v1143 = vadd.f32 0.0, %v1142
        %v1144 = vpop.f32.mrb[0].mxu0
        %v1145 = vpop.f32.mrb[0].mxu0
        %v1146 = vpop.f32.mrb[0].mxu0
        %1147 = vdwg.mxu0
        %v1149 = vsel %vm881, %v987, 0
        %v1152 = vsel %vm943, %v877, 0
        %1154 = vmatprep.subr.bf16.mxu0 0
        %1155 = vmatpush1.bf16.msra.mxu0 %v1152
        %1156 = vmatprep.subr.bf16.mxu0 0
        %1157 = vmatpush1.bf16.msra.mxu0 0
        %1158 = vmatprep.subr.bf16.mxu0 0
        %1159 = vmatpush1.bf16.msra.mxu0 0
        %1160 = vmatprep.subr.bf16.mxu0 0
        %1161 = vmatpush1.bf16.msra.mxu0 0
        %1162 = vmatprep.subr.bf16.mxu0 0
        %1163 = vmatpush1.bf16.msra.mxu0 0
        %1164 = vmatprep.subr.bf16.mxu0 0
        %1165 = vmatpush1.bf16.msra.mxu0 0
        %1166 = vmatprep.subr.bf16.mxu0 0
        %1167 = vmatpush1.bf16.msra.mxu0 0
        %1168 = vmatprep.subr.bf16.mxu0 0
        %1169 = vmatpush1.bf16.msra.mxu0 0
        %1170 = vmatprep.subr.bf16.mxu0 0
        %1171 = vmatpush1.bf16.msra.mxu0 0
        %1172 = vmatprep.subr.bf16.mxu0 0
        %1173 = vmatpush1.bf16.msra.mxu0 0
        %1174 = vmatprep.subr.bf16.mxu0 0
        %1175 = vmatpush1.bf16.msra.mxu0 0
        %1176 = vmatprep.subr.bf16.mxu0 0
        %1177 = vmatpush1.bf16.msra.mxu0 0
        %1178 = vmatprep.subr.bf16.mxu0 0
        %1179 = vmatpush1.bf16.msra.mxu0 0
        %1180 = vmatprep.subr.bf16.mxu0 0
        %1181 = vmatpush1.bf16.msra.mxu0 0
        %1182 = vmatprep.subr.bf16.mxu0 0
        %1183 = vmatpush1.bf16.msra.mxu0 0
        %1184 = vmatprep.subr.bf16.mxu0 0
        %1185 = vmatpush1.bf16.msra.mxu0 0
        %1186 = vmatprep.mubr.bf16.mxu0 0
        %1187 = vmatmul.mubr.bf16.gmra.mrb[0].mxu0 %v1149
        %v1188 = vpop.f32.mrb[0].mxu0
        %v1189 = vadd.f32 %v1143, %v1188
        %v1190 = vpop.f32.mrb[0].mxu0
        %v1191 = vpop.f32.mrb[0].mxu0
        %v1192 = vpop.f32.mrb[0].mxu0
        %1193 = vdwg.mxu0
        %1194 = vrot.lane.b32.xlu0 %v869, 112
        %v1195 = vpop.permute.xlu0 %1194
        %1196 = vrot.lane.b32.xlu0 %v870, 112
        %v1197 = vpop.permute.xlu0 %1196
        %v1199 = vsel %vm881, %v1195, 0
        %v1202 = vsel %vm881, %v1197, 0
        %1204 = vmatprep.subr.bf16.mxu0 0
        %1205 = vmatpush1.bf16.xpose.msra.mxu0 %v1202
        %1206 = vmatprep.subr.bf16.mxu0 0
        %1207 = vmatpush1.bf16.xpose.msra.mxu0 0
        %1208 = vmatprep.subr.bf16.mxu0 0
        %1209 = vmatpush1.bf16.xpose.msra.mxu0 0
        %1210 = vmatprep.subr.bf16.mxu0 0
        %1211 = vmatpush1.bf16.xpose.msra.mxu0 0
        %1212 = vmatprep.subr.bf16.mxu0 0
        %1213 = vmatpush1.bf16.xpose.msra.mxu0 0
        %1214 = vmatprep.subr.bf16.mxu0 0
        %1215 = vmatpush1.bf16.xpose.msra.mxu0 0
        %1216 = vmatprep.subr.bf16.mxu0 0
        %1217 = vmatpush1.bf16.xpose.msra.mxu0 0
        %1218 = vmatprep.subr.bf16.mxu0 0
        %1219 = vmatpush1.bf16.xpose.msra.mxu0 0
        %1220 = vmatprep.subr.bf16.mxu0 0
        %1221 = vmatpush1.bf16.xpose.msra.mxu0 0
        %1222 = vmatprep.subr.bf16.mxu0 0
        %1223 = vmatpush1.bf16.xpose.msra.mxu0 0
        %1224 = vmatprep.subr.bf16.mxu0 0
        %1225 = vmatpush1.bf16.xpose.msra.mxu0 0
        %1226 = vmatprep.subr.bf16.mxu0 0
        %1227 = vmatpush1.bf16.xpose.msra.mxu0 0
        %1228 = vmatprep.subr.bf16.mxu0 0
        %1229 = vmatpush1.bf16.xpose.msra.mxu0 0
        %1230 = vmatprep.subr.bf16.mxu0 0
        %1231 = vmatpush1.bf16.xpose.msra.mxu0 0
        %1232 = vmatprep.subr.bf16.mxu0 0
        %1233 = vmatpush1.bf16.xpose.msra.mxu0 0
        %1234 = vmatprep.subr.bf16.mxu0 0
        %1235 = vmatpush1.bf16.xpose.msra.mxu0 0
        %1236 = vmatprep.mubr.bf16.mxu0 0
        %1237 = vmatmul.mubr.bf16.gmra.mrb[0].mxu0 %v1199
        %v1238 = vpop.f32.mrb[0].mxu0
        %v1239 = vadd.f32 %v876, %v1238
        %v1240 = vpop.f32.mrb[0].mxu0
        %v1241 = vpop.f32.mrb[0].mxu0
        %v1242 = vpop.f32.mrb[0].mxu0
        %1243 = vdwg.mxu0
        %v1244 = vsel %vm881, %v1239, -inf
        %1245 = vmax.xlane.f32.xlu0 %v1244
        %v1246 = vpop.xlane.xlu0 %1245
        %v1247 = vsub.f32 %v1239, %v1246
        %v1248 = vmul.f32 %v1247, 1.442695
        %v1249 = vpow.pop %v1248
        %v1250 = vsel %vm881, %v1249, 0.0
        %1251 = vadd.xlane.f32.xlu0 %v1250
        %v1252 = vpop.xlane.xlu0 %1251
        %v1253 = vrcp.pop %v1252
        %v1254 = vmul.f32 %v1249, %v1253
        %v1255 = vpack.c.bf16 %v1254, %v1254
        %1256 = vrot.lane.b32.xlu0 %v871, 112
        %v1257 = vpop.permute.xlu0 %1256
        %v1259 = vsel %vm881, %v1255, 0
        %v1262 = vsel %vm943, %v1257, 0
        %1264 = vmatprep.subr.bf16.mxu0 0
        %1265 = vmatpush1.bf16.msra.mxu0 %v1262
        %1266 = vmatprep.subr.bf16.mxu0 0
        %1267 = vmatpush1.bf16.msra.mxu0 0
        %1268 = vmatprep.subr.bf16.mxu0 0
        %1269 = vmatpush1.bf16.msra.mxu0 0
        %1270 = vmatprep.subr.bf16.mxu0 0
        %1271 = vmatpush1.bf16.msra.mxu0 0
        %1272 = vmatprep.subr.bf16.mxu0 0
        %1273 = vmatpush1.bf16.msra.mxu0 0
        %1274 = vmatprep.subr.bf16.mxu0 0
        %1275 = vmatpush1.bf16.msra.mxu0 0
        %1276 = vmatprep.subr.bf16.mxu0 0
        %1277 = vmatpush1.bf16.msra.mxu0 0
        %1278 = vmatprep.subr.bf16.mxu0 0
        %1279 = vmatpush1.bf16.msra.mxu0 0
        %1280 = vmatprep.subr.bf16.mxu0 0
        %1281 = vmatpush1.bf16.msra.mxu0 0
        %1282 = vmatprep.subr.bf16.mxu0 0
        %1283 = vmatpush1.bf16.msra.mxu0 0
        %1284 = vmatprep.subr.bf16.mxu0 0
        %1285 = vmatpush1.bf16.msra.mxu0 0
        %1286 = vmatprep.subr.bf16.mxu0 0
        %1287 = vmatpush1.bf16.msra.mxu0 0
        %1288 = vmatprep.subr.bf16.mxu0 0
        %1289 = vmatpush1.bf16.msra.mxu0 0
        %1290 = vmatprep.subr.bf16.mxu0 0
        %1291 = vmatpush1.bf16.msra.mxu0 0
        %1292 = vmatprep.subr.bf16.mxu0 0
        %1293 = vmatpush1.bf16.msra.mxu0 0
        %1294 = vmatprep.subr.bf16.mxu0 0
        %1295 = vmatpush1.bf16.msra.mxu0 0
        %1296 = vmatprep.mubr.bf16.mxu0 0
        %1297 = vmatmul.mubr.bf16.gmra.mrb[0].mxu0 %v1259
        %v1298 = vpop.f32.mrb[0].mxu0
        %v1299 = vadd.f32 0.0, %v1298
        %v1300 = vpop.f32.mrb[0].mxu0
        %v1301 = vpop.f32.mrb[0].mxu0
        %v1302 = vpop.f32.mrb[0].mxu0
        %1303 = vdwg.mxu0
        %v1304 = vpack.c.bf16 %v1299, %v1299
        %v1306 = vsel %vm881, %v1304, 0
        %v1309 = vsel %vm943, %v879, 0
        %1311 = vmatprep.subr.bf16.mxu0 0
        %1312 = vmatpush1.bf16.msra.mxu0 %v1309
        %1313 = vmatprep.subr.bf16.mxu0 0
        %1314 = vmatpush1.bf16.msra.mxu0 0
        %1315 = vmatprep.subr.bf16.mxu0 0
        %1316 = vmatpush1.bf16.msra.mxu0 0
        %1317 = vmatprep.subr.bf16.mxu0 0
        %1318 = vmatpush1.bf16.msra.mxu0 0
        %1319 = vmatprep.subr.bf16.mxu0 0
        %1320 = vmatpush1.bf16.msra.mxu0 0
        %1321 = vmatprep.subr.bf16.mxu0 0
        %1322 = vmatpush1.bf16.msra.mxu0 0
        %1323 = vmatprep.subr.bf16.mxu0 0
        %1324 = vmatpush1.bf16.msra.mxu0 0
        %1325 = vmatprep.subr.bf16.mxu0 0
        %1326 = vmatpush1.bf16.msra.mxu0 0
        %1327 = vmatprep.subr.bf16.mxu0 0
        %1328 = vmatpush1.bf16.msra.mxu0 0
        %1329 = vmatprep.subr.bf16.mxu0 0
        %1330 = vmatpush1.bf16.msra.mxu0 0
        %1331 = vmatprep.subr.bf16.mxu0 0
        %1332 = vmatpush1.bf16.msra.mxu0 0
        %1333 = vmatprep.subr.bf16.mxu0 0
        %1334 = vmatpush1.bf16.msra.mxu0 0
        %1335 = vmatprep.subr.bf16.mxu0 0
        %1336 = vmatpush1.bf16.msra.mxu0 0
        %1337 = vmatprep.subr.bf16.mxu0 0
        %1338 = vmatpush1.bf16.msra.mxu0 0
        %1339 = vmatprep.subr.bf16.mxu0 0
        %1340 = vmatpush1.bf16.msra.mxu0 0
        %1341 = vmatprep.subr.bf16.mxu0 0
        %1342 = vmatpush1.bf16.msra.mxu0 0
        %1343 = vmatprep.mubr.bf16.mxu0 0
        %1344 = vmatmul.mubr.bf16.gmra.mrb[0].mxu0 %v1306
        %v1345 = vpop.f32.mrb[0].mxu0
        %v1346 = vadd.f32 0.0, %v1345
        %v1347 = vpop.f32.mrb[0].mxu0
        %v1348 = vpop.f32.mrb[0].mxu0
        %v1349 = vpop.f32.mrb[0].mxu0
        %1350 = vdwg.mxu0
        %v1351 = vadd.f32 %v1189, %v1346
        %1352 = vrot.lane.b32.xlu0 %v869, 104
        %v1353 = vpop.permute.xlu0 %1352
        %1354 = vrot.lane.b32.xlu0 %v870, 104
        %v1355 = vpop.permute.xlu0 %1354
        %v1357 = vsel %vm881, %v1353, 0
        %v1360 = vsel %vm881, %v1355, 0
        %1362 = vmatprep.subr.bf16.mxu0 0
        %1363 = vmatpush1.bf16.xpose.msra.mxu0 %v1360
        %1364 = vmatprep.subr.bf16.mxu0 0
        %1365 = vmatpush1.bf16.xpose.msra.mxu0 0
        %1366 = vmatprep.subr.bf16.mxu0 0
        %1367 = vmatpush1.bf16.xpose.msra.mxu0 0
        %1368 = vmatprep.subr.bf16.mxu0 0
        %1369 = vmatpush1.bf16.xpose.msra.mxu0 0
        %1370 = vmatprep.subr.bf16.mxu0 0
        %1371 = vmatpush1.bf16.xpose.msra.mxu0 0
        %1372 = vmatprep.subr.bf16.mxu0 0
        %1373 = vmatpush1.bf16.xpose.msra.mxu0 0
        %1374 = vmatprep.subr.bf16.mxu0 0
        %1375 = vmatpush1.bf16.xpose.msra.mxu0 0
        %1376 = vmatprep.subr.bf16.mxu0 0
        %1377 = vmatpush1.bf16.xpose.msra.mxu0 0
        %1378 = vmatprep.subr.bf16.mxu0 0
        %1379 = vmatpush1.bf16.xpose.msra.mxu0 0
        %1380 = vmatprep.subr.bf16.mxu0 0
        %1381 = vmatpush1.bf16.xpose.msra.mxu0 0
        %1382 = vmatprep.subr.bf16.mxu0 0
        %1383 = vmatpush1.bf16.xpose.msra.mxu0 0
        %1384 = vmatprep.subr.bf16.mxu0 0
        %1385 = vmatpush1.bf16.xpose.msra.mxu0 0
        %1386 = vmatprep.subr.bf16.mxu0 0
        %1387 = vmatpush1.bf16.xpose.msra.mxu0 0
        %1388 = vmatprep.subr.bf16.mxu0 0
        %1389 = vmatpush1.bf16.xpose.msra.mxu0 0
        %1390 = vmatprep.subr.bf16.mxu0 0
        %1391 = vmatpush1.bf16.xpose.msra.mxu0 0
        %1392 = vmatprep.subr.bf16.mxu0 0
        %1393 = vmatpush1.bf16.xpose.msra.mxu0 0
        %1394 = vmatprep.mubr.bf16.mxu0 0
        %1395 = vmatmul.mubr.bf16.gmra.mrb[0].mxu0 %v1357
        %v1396 = vpop.f32.mrb[0].mxu0
        %v1397 = vadd.f32 %v876, %v1396
        %v1398 = vpop.f32.mrb[0].mxu0
        %v1399 = vpop.f32.mrb[0].mxu0
        %v1400 = vpop.f32.mrb[0].mxu0
        %1401 = vdwg.mxu0
        %v1402 = vsel %vm881, %v1397, -inf
        %1403 = vmax.xlane.f32.xlu0 %v1402
        %v1404 = vpop.xlane.xlu0 %1403
        %v1405 = vsub.f32 %v1397, %v1404
        %v1406 = vmul.f32 %v1405, 1.442695
        %v1407 = vpow.pop %v1406
        %v1408 = vsel %vm881, %v1407, 0.0
        %1409 = vadd.xlane.f32.xlu0 %v1408
        %v1410 = vpop.xlane.xlu0 %1409
        %v1411 = vrcp.pop %v1410
        %v1412 = vmul.f32 %v1407, %v1411
        %v1413 = vpack.c.bf16 %v1412, %v1412
        %1414 = vrot.lane.b32.xlu0 %v871, 104
        %v1415 = vpop.permute.xlu0 %1414
        %v1417 = vsel %vm881, %v1413, 0
        %v1420 = vsel %vm943, %v1415, 0
        %1422 = vmatprep.subr.bf16.mxu0 0
        %1423 = vmatpush1.bf16.msra.mxu0 %v1420
        %1424 = vmatprep.subr.bf16.mxu0 0
        %1425 = vmatpush1.bf16.msra.mxu0 0
        %1426 = vmatprep.subr.bf16.mxu0 0
        %1427 = vmatpush1.bf16.msra.mxu0 0
        %1428 = vmatprep.subr.bf16.mxu0 0
        %1429 = vmatpush1.bf16.msra.mxu0 0
        %1430 = vmatprep.subr.bf16.mxu0 0
        %1431 = vmatpush1.bf16.msra.mxu0 0
        %1432 = vmatprep.subr.bf16.mxu0 0
        %1433 = vmatpush1.bf16.msra.mxu0 0
        %1434 = vmatprep.subr.bf16.mxu0 0
        %1435 = vmatpush1.bf16.msra.mxu0 0
        %1436 = vmatprep.subr.bf16.mxu0 0
        %1437 = vmatpush1.bf16.msra.mxu0 0
        %1438 = vmatprep.subr.bf16.mxu0 0
        %1439 = vmatpush1.bf16.msra.mxu0 0
        %1440 = vmatprep.subr.bf16.mxu0 0
        %1441 = vmatpush1.bf16.msra.mxu0 0
        %1442 = vmatprep.subr.bf16.mxu0 0
        %1443 = vmatpush1.bf16.msra.mxu0 0
        %1444 = vmatprep.subr.bf16.mxu0 0
        %1445 = vmatpush1.bf16.msra.mxu0 0
        %1446 = vmatprep.subr.bf16.mxu0 0
        %1447 = vmatpush1.bf16.msra.mxu0 0
        %1448 = vmatprep.subr.bf16.mxu0 0
        %1449 = vmatpush1.bf16.msra.mxu0 0
        %1450 = vmatprep.subr.bf16.mxu0 0
        %1451 = vmatpush1.bf16.msra.mxu0 0
        %1452 = vmatprep.subr.bf16.mxu0 0
        %1453 = vmatpush1.bf16.msra.mxu0 0
        %1454 = vmatprep.mubr.bf16.mxu0 0
        %1455 = vmatmul.mubr.bf16.gmra.mrb[0].mxu0 %v1417
        %v1456 = vpop.f32.mrb[0].mxu0
        %v1457 = vadd.f32 0.0, %v1456
        %v1458 = vpop.f32.mrb[0].mxu0
        %v1459 = vpop.f32.mrb[0].mxu0
        %v1460 = vpop.f32.mrb[0].mxu0
        %1461 = vdwg.mxu0
        %v1462 = vpack.c.bf16 %v1457, %v1457
        %v1464 = vsel %vm881, %v1462, 0
        %v1467 = vsel %vm943, %v880, 0
        %1469 = vmatprep.subr.bf16.mxu0 0
        %1470 = vmatpush1.bf16.msra.mxu0 %v1467
        %1471 = vmatprep.subr.bf16.mxu0 0
        %1472 = vmatpush1.bf16.msra.mxu0 0
        %1473 = vmatprep.subr.bf16.mxu0 0
        %1474 = vmatpush1.bf16.msra.mxu0 0
        %1475 = vmatprep.subr.bf16.mxu0 0
        %1476 = vmatpush1.bf16.msra.mxu0 0
        %1477 = vmatprep.subr.bf16.mxu0 0
        %1478 = vmatpush1.bf16.msra.mxu0 0
        %1479 = vmatprep.subr.bf16.mxu0 0
        %1480 = vmatpush1.bf16.msra.mxu0 0
        %1481 = vmatprep.subr.bf16.mxu0 0
        %1482 = vmatpush1.bf16.msra.mxu0 0
        %1483 = vmatprep.subr.bf16.mxu0 0
        %1484 = vmatpush1.bf16.msra.mxu0 0
        %1485 = vmatprep.subr.bf16.mxu0 0
        %1486 = vmatpush1.bf16.msra.mxu0 0
        %1487 = vmatprep.subr.bf16.mxu0 0
        %1488 = vmatpush1.bf16.msra.mxu0 0
        %1489 = vmatprep.subr.bf16.mxu0 0
        %1490 = vmatpush1.bf16.msra.mxu0 0
        %1491 = vmatprep.subr.bf16.mxu0 0
        %1492 = vmatpush1.bf16.msra.mxu0 0
        %1493 = vmatprep.subr.bf16.mxu0 0
        %1494 = vmatpush1.bf16.msra.mxu0 0
        %1495 = vmatprep.subr.bf16.mxu0 0
        %1496 = vmatpush1.bf16.msra.mxu0 0
        %1497 = vmatprep.subr.bf16.mxu0 0
        %1498 = vmatpush1.bf16.msra.mxu0 0
        %1499 = vmatprep.subr.bf16.mxu0 0
        %1500 = vmatpush1.bf16.msra.mxu0 0
        %1501 = vmatprep.mubr.bf16.mxu0 0
        %1502 = vmatmul.mubr.bf16.gmra.mrb[0].mxu0 %v1464
        %v1503 = vpop.f32.mrb[0].mxu0
        %v1504 = vadd.f32 0.0, %v1503
        %v1505 = vpop.f32.mrb[0].mxu0
        %v1506 = vpop.f32.mrb[0].mxu0
        %v1507 = vpop.f32.mrb[0].mxu0
        %1508 = vdwg.mxu0
        %v1509 = vadd.f32 %v1351, %v1504
        %v1510 = vld [vmem:[#allocation20] sm:$0x1]
        %v1512 = vlaneseq
        %v1513 = vshrl.u32 %v1512, 7
        %v1514 = vsub.s32 0, %v1513
        %v1515 = vrot.slane %v1510, %v1514
        %v1517 = vadd.f32 %v1509, %v1515
        %1518 = vst.msk [vmem:[%s664] sm:$0xff] %vm690, %v1517
        %s1519 = sand.u32 %s337, 1
        %s1520 = scalar_lea.sflag [#allocation4], %s1519
        %s1521 = sand.u32 %s337, 1
        %s1522 = smul.addr %s1521, 8
        %s1523 = scalar_lea.vmem [#allocation22], %s1522
        // Predicated region
        $region117: #{tpu_custom_call.1} parent=67 // pred_check
          %p1524 = pneg %p347
        $region118: #{tpu_custom_call.1} parent=67 // pred_check_branch
          %1526 = sbr.rel (%p1524) target = $region120
        $region119: #{tpu_custom_call.1} parent=67 // pred_region
          %s1528 = ssub.s32 128, 128
          %1529 = vsyncadd %s1520, %s1528
          %s1530 = sadd.s32 %s44, %s43
          %s1531 = smul.addr %s1530, 128
          %s1532 = scalar_lea.hbm %s12, %s1531
          %s1534 = sshll.u32 %s1523, 4
          %s1535 = int_to_ptr.vmem [resolvable:$true] %s1534
          %1537 = dma.vmem_to_hbm [thread:$0]  %s1535, 128, %s1532, %s1520
        $region120: #{tpu_custom_call.1} parent=67 // pred_fallthru
          _
      $region68: #{tpu_custom_call.1} parent=5 // pred_fallthru
        _
      %p1538 = scmp.le.s32.totalorder 2, %s34
      // Predicated region
      $region121: #{tpu_custom_call.1} parent=5 // pred_check
        %p1539 = pneg %p1538
      $region122: #{tpu_custom_call.1} parent=5 // pred_check_branch
        %1541 = sbr.rel (%p1539) target = $region124
      $region123: #{tpu_custom_call.1} parent=5 // pred_region
        %s1542 = ssub.s32 %s34, 2
        // Predicated region
        $region125: #{tpu_custom_call.1} parent=123 // pred_check
          %p1543 = pneg %p353
        $region126: #{tpu_custom_call.1} parent=123 // pred_check_branch
          %1545 = sbr.rel (%p1543) target = $region128
        $region127: #{tpu_custom_call.1} parent=123 // pred_region
          %s1546 = sand.u32 %s338, 1
          %s1547 = scalar_lea.sflag [#allocation4], %s1546
          %s1548 = sand.u32 %s338, 1
          %s1549 = smul.addr %s1548, 8
          %s1550 = scalar_lea.vmem [#allocation22], %s1549
          %1551 = dma.done %s1547, 128
        $region128: #{tpu_custom_call.1} parent=123 // pred_fallthru
          _
      $region124: #{tpu_custom_call.1} parent=5 // pred_fallthru
        _
    $region6: #{tpu_custom_call.1} parent=1 // loop_footer
      %s38 = sadd.s32 1, %s34
    $region7: #{tpu_custom_call.1} parent=1 // loop_footer_branch
      %33 = sbr.rel target = $region3
    $region8: #{tpu_custom_call.1} parent=1 // loop_exit
      _
    %1552 = vsyncpa [#allocation3], 1
    %s1553 = scalar_lea.sflag [#allocation3], 1
    %1554 = vsyncpa %s1553, 1
    %1555 = vsyncpa [#allocation6], 1
    %s1556 = scalar_lea.sflag [#allocation6], 1
    %1557 = vsyncpa %s1556, 1
    %1558 = vsyncpa [#allocation9], 1
    %s1559 = scalar_lea.sflag [#allocation9], 1
    %1560 = vsyncpa %s1559, 1
    %1561 = vsyncpa [#allocation12], 1
    %1562 = vsyncpa [#allocation15], 1
    %1563 = vsyncpa [#allocation18], 1
    %1564 = vsyncpa [#allocation21], 1
    %1565 = vsyncpa [#allocation4], 1
    %s1566 = scalar_lea.sflag [#allocation4], 1
    %1567 = vsyncpa %s1566, 1

</llo_original>
